<compile_context>
chip_gen: v6e
topology: v6e:2x2x1
jax: 0.10.0
libtpu: 0.0.40
codegen_flags: <defaults>
</compile_context>

<pallas_src>
import functools

import jax
import jax.numpy as jnp
from jax import lax
from jax.experimental import pallas as pl
from jax.experimental.pallas import tpu as pltpu

LN_EPS = 1e-5          # nn.LayerNorm default
H1, H2 = 1024, 256     # hidden widths fixed by the module


def _round_up(n, m):
    return ((n + m - 1) // m) * m


def _layernorm_relu(h, gamma, beta):
    # h: [tb, F] f32, gamma/beta: [1, F] f32 — all LN math stays in f32
    mu = jnp.mean(h, axis=-1, keepdims=True)
    var = jnp.mean((h - mu) * (h - mu), axis=-1, keepdims=True)
    hn = (h - mu) * lax.rsqrt(var + LN_EPS)
    return jnp.maximum(hn * gamma + beta, 0.0)


def encoder_kernel(
    x_ref,
    w1_ref, b1_ref, g1_ref, be1_ref,
    w2_ref, b2_ref, g2_ref, be2_ref,
    wh_ref, bh_ref,
    out_ref,
):
    # fc1: Linear(input_dim, 1024) + LayerNorm + ReLU
    h1 = jnp.dot(x_ref[...].astype(jnp.bfloat16), w1_ref[...],
                 preferred_element_type=jnp.float32) + b1_ref[...]
    h1 = _layernorm_relu(h1, g1_ref[...], be1_ref[...])

    # fc2: Linear(1024, 256) + LayerNorm + ReLU
    h2 = jnp.dot(h1.astype(jnp.bfloat16), w2_ref[...],
                 preferred_element_type=jnp.float32) + b2_ref[...]
    h2 = _layernorm_relu(h2, g2_ref[...], be2_ref[...])

    # TODO(synk): Dropout(p=0.5) is identity in eval mode; training-mode mask
    # (pltpu.prng_seed / prng_random_bits) not implemented here.

    # fused mean|logvar head: single matmul, lane-dense (128-padded) output
    out = jnp.dot(h2.astype(jnp.bfloat16), wh_ref[...],
                  preferred_element_type=jnp.float32) + bh_ref[...]
    out_ref[...] = out.astype(out_ref.dtype)


@functools.partial(jax.jit, static_argnames=("tile_b",))
def _encoder_pallas(x, params, *, tile_b):
    B, input_dim = x.shape
    latent_dim = params["wm"].shape[1]

    # Effective batch tile: multiple of 8, capped by the requested tile_b.
    eff_tile = min(tile_b, _round_up(B, 8))
    B_pad = _round_up(B, eff_tile)
    if B_pad != B:
        x = jnp.pad(x, ((0, B_pad - B), (0, 0)))

    # Pack the two heads into one lane-dense matmul: [H2, LOUT], LOUT % 128 == 0.
    lout = _round_up(2 * latent_dim, 128)
    wh = jnp.concatenate([params["wm"], params["wv"]], axis=1)
    wh = jnp.pad(wh, ((0, 0), (0, lout - 2 * latent_dim)))
    bh = jnp.concatenate([params["bm"], params["bv"]], axis=1)
    bh = jnp.pad(bh, ((0, 0), (0, lout - 2 * latent_dim)))

    # bf16 MXU operands (halves weight DMA/VMEM bytes); LN stays f32.
    bf = lambda a: a.astype(jnp.bfloat16)
    w1, w2, wh = bf(params["w1"]), bf(params["w2"]), bf(wh)

    full = lambda r, c: pl.BlockSpec((r, c), lambda i: (0, 0))   # resident weight
    row = lambda c: pl.BlockSpec((eff_tile, c), lambda i: (i, 0))  # batch-tiled

    grid_spec = pltpu.PrefetchScalarGridSpec(
        num_scalar_prefetch=0,
        grid=(B_pad // eff_tile,),
        in_specs=[
            row(input_dim),                                              # x
            full(input_dim, H1), full(1, H1), full(1, H1), full(1, H1),  # fc1
            full(H1, H2), full(1, H2), full(1, H2), full(1, H2),         # fc2
            full(H2, lout), full(1, lout),                               # fused head
        ],
        out_specs=row(lout),
    )

    out = pl.pallas_call(
        encoder_kernel,
        out_shape=jax.ShapeDtypeStruct((B_pad, lout), x.dtype),
        grid_spec=grid_spec,
        compiler_params=pltpu.CompilerParams(
            dimension_semantics=("parallel",),  # batch tiles shard across TCs (v7x)
        ),
    )(
        x,
        w1, params["b1"], params["g1"], params["beta1"],
        w2, params["b2"], params["g2"], params["beta2"],
        wh, bh,
    )

    mean = out[:B, :latent_dim]
    logvar = out[:B, latent_dim:2 * latent_dim]
    return mean, logvar


def encoder_forward(x, params, *, tile_b=256):
    """tile_b: max batch rows per grid step (128 is plenty on v5e, 256 on v6e/v7x)."""
    return _encoder_pallas(x, params, tile_b=int(tile_b))


def init_params(key, input_dim, latent_dim):
    """PyTorch-style init: Linear uniform +/- 1/sqrt(fan_in), LayerNorm gamma=1,
    beta=0.  Weights stored transposed vs. PyTorch, i.e. [in, out]."""
    keys = jax.random.split(key, 8)

    def lin(kw, kb, fan_in, fan_out):
        bound = 1.0 / jnp.sqrt(fan_in)
        w = jax.random.uniform(kw, (fan_in, fan_out), jnp.float32, -bound, bound)
        b = jax.random.uniform(kb, (1, fan_out), jnp.float32, -bound, bound)
        return w, b

    w1, b1 = lin(keys[0], keys[1], input_dim, H1)
    w2, b2 = lin(keys[2], keys[3], H1, H2)
    wm, bm = lin(keys[4], keys[5], H2, latent_dim)
    wv, bv = lin(keys[6], keys[7], H2, latent_dim)

    return {
        "w1": w1, "b1": b1, "g1": jnp.ones((1, H1), jnp.float32),
        "beta1": jnp.zeros((1, H1), jnp.float32),
        "w2": w2, "b2": b2, "g2": jnp.ones((1, H2), jnp.float32),
        "beta2": jnp.zeros((1, H2), jnp.float32),
        "wm": wm, "bm": bm,
        "wv": wv, "bv": bv,
    }


def encoder_reference(x, p, *, emulate_bf16=True):
    """Pure-JAX reference of the PyTorch forward (eval mode).  With
    emulate_bf16=True the matmul operands are rounded to bf16 (f32 math),
    matching the kernel's bf16-MXU / f32-accumulation path."""
    if emulate_bf16:
        cast = lambda a: a.astype(jnp.bfloat16).astype(jnp.float32)
    else:
        cast = lambda a: a

    def ln_relu(h, g, b):
        mu = jnp.mean(h, axis=-1, keepdims=True)
        var = jnp.mean((h - mu) ** 2, axis=-1, keepdims=True)
        return jnp.maximum((h - mu) / jnp.sqrt(var + LN_EPS) * g + b, 0.0)

    h1 = ln_relu(cast(x) @ cast(p["w1"]) + p["b1"], p["g1"], p["beta1"])
    h2 = ln_relu(cast(h1) @ cast(p["w2"]) + p["b2"], p["g2"], p["beta2"])
    mean = cast(h2) @ cast(p["wm"]) + p["bm"]
    logvar = cast(h2) @ cast(p["wv"]) + p["bv"]
    return mean, logvar


if __name__ == "__main__":
    key = jax.random.PRNGKey(0)
    k_x, k_p = jax.random.split(key)

    B, input_dim, latent_dim = 8, 32, 16
    x = jax.random.normal(k_x, (B, input_dim), jnp.float32)
    params = init_params(k_p, input_dim, latent_dim)

    mean, logvar = encoder_forward(x, params, tile_b=256)
    jax.block_until_ready((mean, logvar))

    # tight check vs. bf16-operand / f32-accumulation reference
    ref_mean, ref_logvar = encoder_reference(x, params, emulate_bf16=True)
    assert jnp.allclose(mean, ref_mean, atol=2e-3, rtol=2e-3)
    assert jnp.allclose(logvar, ref_logvar, atol=2e-3, rtol=2e-3)

    # loose sanity check vs. pure-f32 reference (bf16 operand rounding noise)
    f32_mean, f32_logvar = encoder_reference(x, params, emulate_bf16=False)
    assert jnp.allclose(mean, f32_mean, atol=5e-2, rtol=5e-2)
    assert jnp.allclose(logvar, f32_logvar, atol=5e-2, rtol=5e-2)

    print("KERNEL_OK")
</pallas_src>

<mosaic_0001>
module attributes {stable_mosaic.version = 11 : i64} {
  func.func @encoder_kernel(%arg0: i32, %arg1: memref<8x32xf32, #tpu.memory_space<vmem>>, %arg2: memref<32x1024xbf16, #tpu.memory_space<vmem>>, %arg3: memref<1x1024xf32, #tpu.memory_space<vmem>>, %arg4: memref<1x1024xf32, #tpu.memory_space<vmem>>, %arg5: memref<1x1024xf32, #tpu.memory_space<vmem>>, %arg6: memref<1024x256xbf16, #tpu.memory_space<vmem>>, %arg7: memref<1x256xf32, #tpu.memory_space<vmem>>, %arg8: memref<1x256xf32, #tpu.memory_space<vmem>>, %arg9: memref<1x256xf32, #tpu.memory_space<vmem>>, %arg10: memref<256x128xbf16, #tpu.memory_space<vmem>>, %arg11: memref<1x128xf32, #tpu.memory_space<vmem>>, %arg12: memref<8x128xf32, #tpu.memory_space<vmem>>) attributes {dimension_semantics = [#tpu.dimension_semantics<parallel>], iteration_bounds = array<i64: 1>, scalar_prefetch = 0 : i64, scratch_operands = 0 : i64, tpu.core_type = #tpu.core_type<tc>, window_params = [{transform_indices = @transform_0, window_bounds = array<i64: 8, 32>}, {pipeline_mode = #tpu.pipeline_mode<synchronous>, transform_indices = @transform_1, window_bounds = array<i64: 32, 1024>}, {pipeline_mode = #tpu.pipeline_mode<synchronous>, transform_indices = @transform_2, window_bounds = array<i64: 1, 1024>}, {pipeline_mode = #tpu.pipeline_mode<synchronous>, transform_indices = @transform_3, window_bounds = array<i64: 1, 1024>}, {pipeline_mode = #tpu.pipeline_mode<synchronous>, transform_indices = @transform_4, window_bounds = array<i64: 1, 1024>}, {pipeline_mode = #tpu.pipeline_mode<synchronous>, transform_indices = @transform_5, window_bounds = array<i64: 1024, 256>}, {pipeline_mode = #tpu.pipeline_mode<synchronous>, transform_indices = @transform_6, window_bounds = array<i64: 1, 256>}, {pipeline_mode = #tpu.pipeline_mode<synchronous>, transform_indices = @transform_7, window_bounds = array<i64: 1, 256>}, {pipeline_mode = #tpu.pipeline_mode<synchronous>, transform_indices = @transform_8, window_bounds = array<i64: 1, 256>}, {pipeline_mode = #tpu.pipeline_mode<synchronous>, transform_indices = @transform_9, window_bounds = array<i64: 256, 128>}, {pipeline_mode = #tpu.pipeline_mode<synchronous>, transform_indices = @transform_10, window_bounds = array<i64: 1, 128>}, {transform_indices = @transform_11, window_bounds = array<i64: 8, 128>}]} {
    %c0 = arith.constant 0 : index
    %c0_0 = arith.constant 0 : index
    %0 = vector.load %arg1[%c0, %c0_0] : memref<8x32xf32, #tpu.memory_space<vmem>>, vector<8x32xf32>
    %1 = arith.truncf %0 : vector<8x32xf32> to vector<8x32xbf16>
    %c0_1 = arith.constant 0 : index
    %c0_2 = arith.constant 0 : index
    %2 = vector.load %arg2[%c0_1, %c0_2] : memref<32x1024xbf16, #tpu.memory_space<vmem>>, vector<32x1024xbf16>
    %cst = arith.constant dense<0.000000e+00> : vector<8x1024xf32>
    %3 = tpu.matmul %1, %2, %cst {dimension_numbers = #tpu.dot_dimension_numbers<[1], [0], [0], [1], [0, 0, 1, 1], [], []>} : vector<8x32xbf16>, vector<32x1024xbf16>, vector<8x1024xf32> -> vector<8x1024xf32>
    %c0_3 = arith.constant 0 : index
    %c0_4 = arith.constant 0 : index
    %4 = vector.load %arg3[%c0_3, %c0_4] : memref<1x1024xf32, #tpu.memory_space<vmem>>, vector<1x1024xf32>
    %5 = vector.broadcast %4 : vector<1x1024xf32> to vector<8x1024xf32>
    %6 = arith.addf %3, %5 : vector<8x1024xf32>
    %c0_5 = arith.constant 0 : index
    %c0_6 = arith.constant 0 : index
    %7 = vector.load %arg4[%c0_5, %c0_6] : memref<1x1024xf32, #tpu.memory_space<vmem>>, vector<1x1024xf32>
    %c0_7 = arith.constant 0 : index
    %c0_8 = arith.constant 0 : index
    %8 = vector.load %arg5[%c0_7, %c0_8] : memref<1x1024xf32, #tpu.memory_space<vmem>>, vector<1x1024xf32>
    %cst_9 = arith.constant dense<0.000000e+00> : vector<8xf32>
    %9 = vector.multi_reduction <add>, %6, %cst_9 [1] : vector<8x1024xf32> to vector<8xf32>
    %10 = vector.shape_cast %9 : vector<8xf32> to vector<8x1xf32>
    %cst_10 = arith.constant 1.024000e+03 : f32
    %11 = vector.broadcast %cst_10 : f32 to vector<8x1xf32>
    %12 = arith.divf %10, %11 : vector<8x1xf32>
    %13 = vector.broadcast %12 : vector<8x1xf32> to vector<8x1024xf32>
    %14 = arith.subf %6, %13 : vector<8x1024xf32>
    %15 = vector.broadcast %12 : vector<8x1xf32> to vector<8x1024xf32>
    %16 = arith.subf %6, %15 : vector<8x1024xf32>
    %17 = arith.mulf %14, %16 : vector<8x1024xf32>
    %cst_11 = arith.constant dense<0.000000e+00> : vector<8xf32>
    %18 = vector.multi_reduction <add>, %17, %cst_11 [1] : vector<8x1024xf32> to vector<8xf32>
    %19 = vector.shape_cast %18 : vector<8xf32> to vector<8x1xf32>
    %cst_12 = arith.constant 1.024000e+03 : f32
    %20 = vector.broadcast %cst_12 : f32 to vector<8x1xf32>
    %21 = arith.divf %19, %20 : vector<8x1xf32>
    %22 = vector.broadcast %12 : vector<8x1xf32> to vector<8x1024xf32>
    %23 = arith.subf %6, %22 : vector<8x1024xf32>
    %cst_13 = arith.constant 9.99999974E-6 : f32
    %24 = vector.broadcast %cst_13 : f32 to vector<8x1xf32>
    %25 = arith.addf %21, %24 : vector<8x1xf32>
    %26 = math.rsqrt %25 : vector<8x1xf32>
    %27 = vector.broadcast %26 : vector<8x1xf32> to vector<8x1024xf32>
    %28 = arith.mulf %23, %27 : vector<8x1024xf32>
    %29 = vector.broadcast %7 : vector<1x1024xf32> to vector<8x1024xf32>
    %30 = arith.mulf %28, %29 : vector<8x1024xf32>
    %31 = vector.broadcast %8 : vector<1x1024xf32> to vector<8x1024xf32>
    %32 = arith.addf %30, %31 : vector<8x1024xf32>
    %cst_14 = arith.constant 0.000000e+00 : f32
    %33 = vector.broadcast %cst_14 : f32 to vector<8x1024xf32>
    %34 = arith.maximumf %32, %33 : vector<8x1024xf32>
    %35 = arith.truncf %34 : vector<8x1024xf32> to vector<8x1024xbf16>
    %c0_15 = arith.constant 0 : index
    %c0_16 = arith.constant 0 : index
    %36 = vector.load %arg6[%c0_15, %c0_16] : memref<1024x256xbf16, #tpu.memory_space<vmem>>, vector<1024x256xbf16>
    %cst_17 = arith.constant dense<0.000000e+00> : vector<8x256xf32>
    %37 = tpu.matmul %35, %36, %cst_17 {dimension_numbers = #tpu.dot_dimension_numbers<[1], [0], [0], [1], [0, 0, 1, 1], [], []>} : vector<8x1024xbf16>, vector<1024x256xbf16>, vector<8x256xf32> -> vector<8x256xf32>
    %c0_18 = arith.constant 0 : index
    %c0_19 = arith.constant 0 : index
    %38 = vector.load %arg7[%c0_18, %c0_19] : memref<1x256xf32, #tpu.memory_space<vmem>>, vector<1x256xf32>
    %39 = vector.broadcast %38 : vector<1x256xf32> to vector<8x256xf32>
    %40 = arith.addf %37, %39 : vector<8x256xf32>
    %c0_20 = arith.constant 0 : index
    %c0_21 = arith.constant 0 : index
    %41 = vector.load %arg8[%c0_20, %c0_21] : memref<1x256xf32, #tpu.memory_space<vmem>>, vector<1x256xf32>
    %c0_22 = arith.constant 0 : index
    %c0_23 = arith.constant 0 : index
    %42 = vector.load %arg9[%c0_22, %c0_23] : memref<1x256xf32, #tpu.memory_space<vmem>>, vector<1x256xf32>
    %cst_24 = arith.constant dense<0.000000e+00> : vector<8xf32>
    %43 = vector.multi_reduction <add>, %40, %cst_24 [1] : vector<8x256xf32> to vector<8xf32>
    %44 = vector.shape_cast %43 : vector<8xf32> to vector<8x1xf32>
    %cst_25 = arith.constant 2.560000e+02 : f32
    %45 = vector.broadcast %cst_25 : f32 to vector<8x1xf32>
    %46 = arith.divf %44, %45 : vector<8x1xf32>
    %47 = vector.broadcast %46 : vector<8x1xf32> to vector<8x256xf32>
    %48 = arith.subf %40, %47 : vector<8x256xf32>
    %49 = vector.broadcast %46 : vector<8x1xf32> to vector<8x256xf32>
    %50 = arith.subf %40, %49 : vector<8x256xf32>
    %51 = arith.mulf %48, %50 : vector<8x256xf32>
    %cst_26 = arith.constant dense<0.000000e+00> : vector<8xf32>
    %52 = vector.multi_reduction <add>, %51, %cst_26 [1] : vector<8x256xf32> to vector<8xf32>
    %53 = vector.shape_cast %52 : vector<8xf32> to vector<8x1xf32>
    %cst_27 = arith.constant 2.560000e+02 : f32
    %54 = vector.broadcast %cst_27 : f32 to vector<8x1xf32>
    %55 = arith.divf %53, %54 : vector<8x1xf32>
    %56 = vector.broadcast %46 : vector<8x1xf32> to vector<8x256xf32>
    %57 = arith.subf %40, %56 : vector<8x256xf32>
    %cst_28 = arith.constant 9.99999974E-6 : f32
    %58 = vector.broadcast %cst_28 : f32 to vector<8x1xf32>
    %59 = arith.addf %55, %58 : vector<8x1xf32>
    %60 = math.rsqrt %59 : vector<8x1xf32>
    %61 = vector.broadcast %60 : vector<8x1xf32> to vector<8x256xf32>
    %62 = arith.mulf %57, %61 : vector<8x256xf32>
    %63 = vector.broadcast %41 : vector<1x256xf32> to vector<8x256xf32>
    %64 = arith.mulf %62, %63 : vector<8x256xf32>
    %65 = vector.broadcast %42 : vector<1x256xf32> to vector<8x256xf32>
    %66 = arith.addf %64, %65 : vector<8x256xf32>
    %cst_29 = arith.constant 0.000000e+00 : f32
    %67 = vector.broadcast %cst_29 : f32 to vector<8x256xf32>
    %68 = arith.maximumf %66, %67 : vector<8x256xf32>
    %69 = arith.truncf %68 : vector<8x256xf32> to vector<8x256xbf16>
    %c0_30 = arith.constant 0 : index
    %c0_31 = arith.constant 0 : index
    %70 = vector.load %arg10[%c0_30, %c0_31] : memref<256x128xbf16, #tpu.memory_space<vmem>>, vector<256x128xbf16>
    %cst_32 = arith.constant dense<0.000000e+00> : vector<8x128xf32>
    %71 = tpu.matmul %69, %70, %cst_32 {dimension_numbers = #tpu.dot_dimension_numbers<[1], [0], [0], [1], [0, 0, 1, 1], [], []>} : vector<8x256xbf16>, vector<256x128xbf16>, vector<8x128xf32> -> vector<8x128xf32>
    %c0_33 = arith.constant 0 : index
    %c0_34 = arith.constant 0 : index
    %72 = vector.load %arg11[%c0_33, %c0_34] : memref<1x128xf32, #tpu.memory_space<vmem>>, vector<1x128xf32>
    %73 = vector.broadcast %72 : vector<1x128xf32> to vector<8x128xf32>
    %74 = arith.addf %71, %73 : vector<8x128xf32>
    %c0_35 = arith.constant 0 : index
    %c0_36 = arith.constant 0 : index
    %75 = vector.load %arg12[%c0_35, %c0_36] : memref<8x128xf32, #tpu.memory_space<vmem>>, vector<8x128xf32>
    tpu.vector_store %arg12[%c0_35, %c0_36], %74 {strides = array<i32>} : memref<8x128xf32, #tpu.memory_space<vmem>>, vector<8x128xf32>,
    return
  }
  func.func @transform_0(%arg0: i32) -> (i32, i32) {
    %c0_i32 = arith.constant 0 : i32
    %c0_i32_0 = arith.constant 0 : i32
    return %arg0, %c0_i32 : i32, i32
  }
  func.func @transform_1(%arg0: i32) -> (i32, i32) {
    %c0_i32 = arith.constant 0 : i32
    %c0_i32_0 = arith.constant 0 : i32
    %c0_i32_1 = arith.constant 0 : i32
    return %c0_i32, %c0_i32_0 : i32, i32
  }
  func.func @transform_2(%arg0: i32) -> (i32, i32) {
    %c0_i32 = arith.constant 0 : i32
    %c0_i32_0 = arith.constant 0 : i32
    %c0_i32_1 = arith.constant 0 : i32
    return %c0_i32, %c0_i32_0 : i32, i32
  }
  func.func @transform_3(%arg0: i32) -> (i32, i32) {
    %c0_i32 = arith.constant 0 : i32
    %c0_i32_0 = arith.constant 0 : i32
    %c0_i32_1 = arith.constant 0 : i32
    return %c0_i32, %c0_i32_0 : i32, i32
  }
  func.func @transform_4(%arg0: i32) -> (i32, i32) {
    %c0_i32 = arith.constant 0 : i32
    %c0_i32_0 = arith.constant 0 : i32
    %c0_i32_1 = arith.constant 0 : i32
    return %c0_i32, %c0_i32_0 : i32, i32
  }
  func.func @transform_5(%arg0: i32) -> (i32, i32) {
    %c0_i32 = arith.constant 0 : i32
    %c0_i32_0 = arith.constant 0 : i32
    %c0_i32_1 = arith.constant 0 : i32
    return %c0_i32, %c0_i32_0 : i32, i32
  }
  func.func @transform_6(%arg0: i32) -> (i32, i32) {
    %c0_i32 = arith.constant 0 : i32
    %c0_i32_0 = arith.constant 0 : i32
    %c0_i32_1 = arith.constant 0 : i32
    return %c0_i32, %c0_i32_0 : i32, i32
  }
  func.func @transform_7(%arg0: i32) -> (i32, i32) {
    %c0_i32 = arith.constant 0 : i32
    %c0_i32_0 = arith.constant 0 : i32
    %c0_i32_1 = arith.constant 0 : i32
    return %c0_i32, %c0_i32_0 : i32, i32
  }
  func.func @transform_8(%arg0: i32) -> (i32, i32) {
    %c0_i32 = arith.constant 0 : i32
    %c0_i32_0 = arith.constant 0 : i32
    %c0_i32_1 = arith.constant 0 : i32
    return %c0_i32, %c0_i32_0 : i32, i32
  }
  func.func @transform_9(%arg0: i32) -> (i32, i32) {
    %c0_i32 = arith.constant 0 : i32
    %c0_i32_0 = arith.constant 0 : i32
    %c0_i32_1 = arith.constant 0 : i32
    return %c0_i32, %c0_i32_0 : i32, i32
  }
  func.func @transform_10(%arg0: i32) -> (i32, i32) {
    %c0_i32 = arith.constant 0 : i32
    %c0_i32_0 = arith.constant 0 : i32
    %c0_i32_1 = arith.constant 0 : i32
    return %c0_i32, %c0_i32_0 : i32, i32
  }
  func.func @transform_11(%arg0: i32) -> (i32, i32) {
    %c0_i32 = arith.constant 0 : i32
    %c0_i32_0 = arith.constant 0 : i32
    return %arg0, %c0_i32 : i32, i32
  }
}

</mosaic_0001>

<llo_original>
// kernel: _encoder_pallas.1
$region0: #{_encoder_pallas.1}
  #allocation0 [shape = 'u32[]', space=smem, size = 0x4, offset = 0x4, fixed_abs, tag = 'smem constant byte address 0x4 - core index']
  #allocation1 [shape = 'u32[144,128]{1,0:T(1,128)}', space=vmem, size = 0x12000, scoped, tag = 'internal scratch']
  %s0 = inlined_call_operand.vmem [shape: f32[8,32], index: 0, kind: input, shape index: {}]
  %s1 = inlined_call_operand.vmem [shape: bf16[32,1024], index: 1, kind: input, shape index: {}]
  %s2 = inlined_call_operand.vmem [shape: f32[1,1024], index: 2, kind: input, shape index: {}]
  %s3 = inlined_call_operand.vmem [shape: f32[1,1024], index: 3, kind: input, shape index: {}]
  %s4 = inlined_call_operand.vmem [shape: f32[1,1024], index: 4, kind: input, shape index: {}]
  %s5 = inlined_call_operand.vmem [shape: bf16[1024,256], index: 5, kind: input, shape index: {}]
  %s6 = inlined_call_operand.vmem [shape: f32[1,256], index: 6, kind: input, shape index: {}]
  %s7 = inlined_call_operand.vmem [shape: f32[1,256], index: 7, kind: input, shape index: {}]
  %s8 = inlined_call_operand.vmem [shape: f32[1,256], index: 8, kind: input, shape index: {}]
  %s9 = inlined_call_operand.vmem [shape: bf16[256,128], index: 9, kind: input, shape index: {}]
  %s10 = inlined_call_operand.vmem [shape: f32[1,128], index: 10, kind: input, shape index: {}]
  %s11 = inlined_call_operand.vmem [shape: f32[8,128], index: 11, kind: output, shape index: {}]
  %s12 = sld [smem:[#allocation0]]
  $region54: #{_encoder_pallas.1} parent=0
    _
  %s14 = ssub.s32 1, %s12
  %s15 = scalar_select 0, %s14, %s12
  // Predicated region
  $region2: #{_encoder_pallas.1} parent=0 // pred_check
    _
  $region3: #{_encoder_pallas.1} parent=0 // pred_check_branch
    %17 = sbr.rel (0) target = $region5
  $region4: #{_encoder_pallas.1} parent=0 // pred_region
    _
  $region5: #{_encoder_pallas.1} parent=0 // pred_fallthru
    _
  // Predicated region
  $region6: #{_encoder_pallas.1} parent=0 // pred_check
    _
  $region7: #{_encoder_pallas.1} parent=0 // pred_check_branch
    %19 = sbr.rel (0) target = $region9
  $region8: #{_encoder_pallas.1} parent=0 // pred_region
    _
  $region9: #{_encoder_pallas.1} parent=0 // pred_fallthru
    _
  // Predicated region
  $region10: #{_encoder_pallas.1} parent=0 // pred_check
    _
  $region11: #{_encoder_pallas.1} parent=0 // pred_check_branch
    %21 = sbr.rel (0) target = $region13
  $region12: #{_encoder_pallas.1} parent=0 // pred_region
    _
  $region13: #{_encoder_pallas.1} parent=0 // pred_fallthru
    _
  // Predicated region
  $region14: #{_encoder_pallas.1} parent=0 // pred_check
    _
  $region15: #{_encoder_pallas.1} parent=0 // pred_check_branch
    %23 = sbr.rel (0) target = $region17
  $region16: #{_encoder_pallas.1} parent=0 // pred_region
    _
  $region17: #{_encoder_pallas.1} parent=0 // pred_fallthru
    _
  // Predicated region
  $region18: #{_encoder_pallas.1} parent=0 // pred_check
    _
  $region19: #{_encoder_pallas.1} parent=0 // pred_check_branch
    %25 = sbr.rel (0) target = $region21
  $region20: #{_encoder_pallas.1} parent=0 // pred_region
    _
  $region21: #{_encoder_pallas.1} parent=0 // pred_fallthru
    _
  // Predicated region
  $region22: #{_encoder_pallas.1} parent=0 // pred_check
    _
  $region23: #{_encoder_pallas.1} parent=0 // pred_check_branch
    %27 = sbr.rel (0) target = $region25
  $region24: #{_encoder_pallas.1} parent=0 // pred_region
    _
  $region25: #{_encoder_pallas.1} parent=0 // pred_fallthru
    _
  // Predicated region
  $region26: #{_encoder_pallas.1} parent=0 // pred_check
    _
  $region27: #{_encoder_pallas.1} parent=0 // pred_check_branch
    %29 = sbr.rel (0) target = $region29
  $region28: #{_encoder_pallas.1} parent=0 // pred_region
    _
  $region29: #{_encoder_pallas.1} parent=0 // pred_fallthru
    _
  // Predicated region
  $region30: #{_encoder_pallas.1} parent=0 // pred_check
    _
  $region31: #{_encoder_pallas.1} parent=0 // pred_check_branch
    %31 = sbr.rel (0) target = $region33
  $region32: #{_encoder_pallas.1} parent=0 // pred_region
    _
  $region33: #{_encoder_pallas.1} parent=0 // pred_fallthru
    _
  // Predicated region
  $region34: #{_encoder_pallas.1} parent=0 // pred_check
    _
  $region35: #{_encoder_pallas.1} parent=0 // pred_check_branch
    %33 = sbr.rel (0) target = $region37
  $region36: #{_encoder_pallas.1} parent=0 // pred_region
    _
  $region37: #{_encoder_pallas.1} parent=0 // pred_fallthru
    _
  // Predicated region
  $region38: #{_encoder_pallas.1} parent=0 // pred_check
    _
  $region39: #{_encoder_pallas.1} parent=0 // pred_check_branch
    %35 = sbr.rel (0) target = $region41
  $region40: #{_encoder_pallas.1} parent=0 // pred_region
    _
  $region41: #{_encoder_pallas.1} parent=0 // pred_fallthru
    _
  // Predicated region
  $region42: #{_encoder_pallas.1} parent=0 // pred_check
    _
  $region43: #{_encoder_pallas.1} parent=0 // pred_check_branch
    %37 = sbr.rel (0) target = $region45
  $region44: #{_encoder_pallas.1} parent=0 // pred_region
    _
  $region45: #{_encoder_pallas.1} parent=0 // pred_fallthru
    _
  %v39 = vld [vmem:[%s0] sm:$0xff]
  %v40 = vpack.c.bf16 %v39, %v39
  %v41 = vld [vmem:[%s1] sm:$0xff]
  %v42 = vld [vmem:[%s1 + $0x8] sm:$0xff]
  %v43 = vld [vmem:[%s1 + $0x10] sm:$0xff]
  %v44 = vld [vmem:[%s1 + $0x18] sm:$0xff]
  %v45 = vld [vmem:[%s1 + $0x20] sm:$0xff]
  %v46 = vld [vmem:[%s1 + $0x28] sm:$0xff]
  %v47 = vld [vmem:[%s1 + $0x30] sm:$0xff]
  %v48 = vld [vmem:[%s1 + $0x38] sm:$0xff]
  %v49 = vld [vmem:[%s1 + $0x40] sm:$0xff]
  %v50 = vld [vmem:[%s1 + $0x48] sm:$0xff]
  %v51 = vld [vmem:[%s1 + $0x50] sm:$0xff]
  %v52 = vld [vmem:[%s1 + $0x58] sm:$0xff]
  %v53 = vld [vmem:[%s1 + $0x60] sm:$0xff]
  %v54 = vld [vmem:[%s1 + $0x68] sm:$0xff]
  %v55 = vld [vmem:[%s1 + $0x70] sm:$0xff]
  %v56 = vld [vmem:[%s1 + $0x78] sm:$0xff]
  %v57 = vld [vmem:[%s2] sm:$0xff]
  %v59 = vlaneseq
  %v60 = vshrl.u32 %v59, 7
  %v61 = vsub.s32 0, %v60
  %v62 = vrot.slane %v57, %v61
  %v63 = vlaneseq
  %v64 = vshrl.u32 %v63, 7
  %v65 = vsub.s32 1, %v64
  %v66 = vrot.slane %v57, %v65
  %v67 = vlaneseq
  %v68 = vshrl.u32 %v67, 7
  %v69 = vsub.s32 2, %v68
  %v70 = vrot.slane %v57, %v69
  %v71 = vlaneseq
  %v72 = vshrl.u32 %v71, 7
  %v73 = vsub.s32 3, %v72
  %v74 = vrot.slane %v57, %v73
  %v75 = vlaneseq
  %v76 = vshrl.u32 %v75, 7
  %v77 = vsub.s32 4, %v76
  %v78 = vrot.slane %v57, %v77
  %v79 = vlaneseq
  %v80 = vshrl.u32 %v79, 7
  %v81 = vsub.s32 5, %v80
  %v82 = vrot.slane %v57, %v81
  %v83 = vlaneseq
  %v84 = vshrl.u32 %v83, 7
  %v85 = vsub.s32 6, %v84
  %v86 = vrot.slane %v57, %v85
  %v87 = vlaneseq
  %v88 = vshrl.u32 %v87, 7
  %v89 = vsub.s32 7, %v88
  %v90 = vrot.slane %v57, %v89
  %v115 = vunpack.c.l.b16 %v41
  %v116 = vunpack.c.h.b16 %v41
  %v117 = vunpack.c.l.b16 %v42
  %v118 = vunpack.c.h.b16 %v42
  %v119 = vunpack.c.l.b16 %v43
  %v120 = vunpack.c.h.b16 %v43
  %v121 = vunpack.c.l.b16 %v44
  %v122 = vunpack.c.h.b16 %v44
  %v123 = vunpack.c.l.b16 %v45
  %v124 = vunpack.c.h.b16 %v45
  %v125 = vunpack.c.l.b16 %v46
  %v126 = vunpack.c.h.b16 %v46
  %v127 = vunpack.c.l.b16 %v47
  %v128 = vunpack.c.h.b16 %v47
  %v129 = vunpack.c.l.b16 %v48
  %v130 = vunpack.c.h.b16 %v48
  %v131 = vunpack.c.l.b16 %v49
  %v132 = vunpack.c.h.b16 %v49
  %v133 = vunpack.c.l.b16 %v50
  %v134 = vunpack.c.h.b16 %v50
  %v135 = vunpack.c.l.b16 %v51
  %v136 = vunpack.c.h.b16 %v51
  %v137 = vunpack.c.l.b16 %v52
  %v138 = vunpack.c.h.b16 %v52
  %v139 = vunpack.c.l.b16 %v53
  %v140 = vunpack.c.h.b16 %v53
  %v141 = vunpack.c.l.b16 %v54
  %v142 = vunpack.c.h.b16 %v54
  %v143 = vunpack.c.l.b16 %v55
  %v144 = vunpack.c.h.b16 %v55
  %v145 = vunpack.c.l.b16 %v56
  %v146 = vunpack.c.h.b16 %v56
  %v147 = vpack.c.b16 %v123, %v115
  %v148 = vpack.c.b16 %v124, %v116
  %v149 = vpack.c.b16 %v125, %v117
  %v150 = vpack.c.b16 %v126, %v118
  %v151 = vpack.c.b16 %v127, %v119
  %v152 = vpack.c.b16 %v128, %v120
  %v153 = vpack.c.b16 %v129, %v121
  %v154 = vpack.c.b16 %v130, %v122
  %v155 = vpack.c.b16 %v139, %v131
  %v156 = vpack.c.b16 %v140, %v132
  %v157 = vpack.c.b16 %v141, %v133
  %v158 = vpack.c.b16 %v142, %v134
  %v159 = vpack.c.b16 %v143, %v135
  %v160 = vpack.c.b16 %v144, %v136
  %v161 = vpack.c.b16 %v145, %v137
  %v162 = vpack.c.b16 %v146, %v138
  %vm179 = vcmask 261120
  %v181 = vsel %vm179, %v40, 0
  %183 = vmatprep.subr.bf16.mxu0 0
  %184 = vmatpush1.bf16.msra.mxu0 0
  %185 = vmatprep.subr.bf16.mxu0 0
  %186 = vmatpush1.bf16.msra.mxu0 0
  %187 = vmatprep.subr.bf16.mxu0 0
  %188 = vmatpush1.bf16.msra.mxu0 0
  %189 = vmatprep.subr.bf16.mxu0 0
  %190 = vmatpush1.bf16.msra.mxu0 0
  %191 = vmatprep.subr.bf16.mxu0 0
  %192 = vmatpush1.bf16.msra.mxu0 0
  %193 = vmatprep.subr.bf16.mxu0 0
  %194 = vmatpush1.bf16.msra.mxu0 0
  %195 = vmatprep.subr.bf16.mxu0 %v156
  %196 = vmatpush1.bf16.msra.mxu0 %v155
  %197 = vmatprep.subr.bf16.mxu0 %v148
  %198 = vmatpush1.bf16.msra.mxu0 %v147
  %199 = vmatprep.subr.bf16.mxu0 0
  %200 = vmatpush2.bf16.msra.mxu0 0
  %201 = vmatprep.subr.bf16.mxu0 0
  %202 = vmatpush2.bf16.msra.mxu0 0
  %203 = vmatprep.subr.bf16.mxu0 0
  %204 = vmatpush2.bf16.msra.mxu0 0
  %205 = vmatprep.subr.bf16.mxu0 0
  %206 = vmatpush2.bf16.msra.mxu0 0
  %207 = vmatprep.subr.bf16.mxu0 0
  %208 = vmatpush2.bf16.msra.mxu0 0
  %209 = vmatprep.subr.bf16.mxu0 0
  %210 = vmatpush2.bf16.msra.mxu0 0
  %211 = vmatprep.subr.bf16.mxu0 0
  %212 = vmatpush2.bf16.msra.mxu0 0
  %213 = vmatprep.subr.bf16.mxu0 0
  %214 = vmatpush2.bf16.msra.mxu0 0
  %215 = vmatprep.mubr.bf16.mxu0 0
  %216 = vmatmul.mubr.bf16.gmra.mxu0 %v181
  %v217 = vpop.f32.mrf.mxu0
  %v218 = vadd.f32 %v62, %v217
  %v219 = vpop.f32.mrf.mxu0
  %v220 = vadd.f32 %v66, %v219
  %v221 = vpop.f32.mrf.mxu0
  %v222 = vpop.f32.mrf.mxu0
  %223 = vdwg.mxu0
  %224 = vmatprep.subr.bf16.mxu0 0
  %225 = vmatpush1.bf16.msra.mxu0 0
  %226 = vmatprep.subr.bf16.mxu0 0
  %227 = vmatpush1.bf16.msra.mxu0 0
  %228 = vmatprep.subr.bf16.mxu0 0
  %229 = vmatpush1.bf16.msra.mxu0 0
  %230 = vmatprep.subr.bf16.mxu0 0
  %231 = vmatpush1.bf16.msra.mxu0 0
  %232 = vmatprep.subr.bf16.mxu0 0
  %233 = vmatpush1.bf16.msra.mxu0 0
  %234 = vmatprep.subr.bf16.mxu0 0
  %235 = vmatpush1.bf16.msra.mxu0 0
  %236 = vmatprep.subr.bf16.mxu0 %v158
  %237 = vmatpush1.bf16.msra.mxu0 %v157
  %238 = vmatprep.subr.bf16.mxu0 %v150
  %239 = vmatpush1.bf16.msra.mxu0 %v149
  %240 = vmatprep.subr.bf16.mxu0 0
  %241 = vmatpush2.bf16.msra.mxu0 0
  %242 = vmatprep.subr.bf16.mxu0 0
  %243 = vmatpush2.bf16.msra.mxu0 0
  %244 = vmatprep.subr.bf16.mxu0 0
  %245 = vmatpush2.bf16.msra.mxu0 0
  %246 = vmatprep.subr.bf16.mxu0 0
  %247 = vmatpush2.bf16.msra.mxu0 0
  %248 = vmatprep.subr.bf16.mxu0 0
  %249 = vmatpush2.bf16.msra.mxu0 0
  %250 = vmatprep.subr.bf16.mxu0 0
  %251 = vmatpush2.bf16.msra.mxu0 0
  %252 = vmatprep.subr.bf16.mxu0 0
  %253 = vmatpush2.bf16.msra.mxu0 0
  %254 = vmatprep.subr.bf16.mxu0 0
  %255 = vmatpush2.bf16.msra.mxu0 0
  %256 = vmatprep.mubr.bf16.mxu0 0
  %257 = vmatmul.mubr.bf16.gmra.mxu0 %v181
  %v258 = vpop.f32.mrf.mxu0
  %v259 = vadd.f32 %v70, %v258
  %v260 = vpop.f32.mrf.mxu0
  %v261 = vadd.f32 %v74, %v260
  %v262 = vpop.f32.mrf.mxu0
  %v263 = vpop.f32.mrf.mxu0
  %264 = vdwg.mxu0
  %265 = vmatprep.subr.bf16.mxu0 0
  %266 = vmatpush1.bf16.msra.mxu0 0
  %267 = vmatprep.subr.bf16.mxu0 0
  %268 = vmatpush1.bf16.msra.mxu0 0
  %269 = vmatprep.subr.bf16.mxu0 0
  %270 = vmatpush1.bf16.msra.mxu0 0
  %271 = vmatprep.subr.bf16.mxu0 0
  %272 = vmatpush1.bf16.msra.mxu0 0
  %273 = vmatprep.subr.bf16.mxu0 0
  %274 = vmatpush1.bf16.msra.mxu0 0
  %275 = vmatprep.subr.bf16.mxu0 0
  %276 = vmatpush1.bf16.msra.mxu0 0
  %277 = vmatprep.subr.bf16.mxu0 %v160
  %278 = vmatpush1.bf16.msra.mxu0 %v159
  %279 = vmatprep.subr.bf16.mxu0 %v152
  %280 = vmatpush1.bf16.msra.mxu0 %v151
  %281 = vmatprep.subr.bf16.mxu0 0
  %282 = vmatpush2.bf16.msra.mxu0 0
  %283 = vmatprep.subr.bf16.mxu0 0
  %284 = vmatpush2.bf16.msra.mxu0 0
  %285 = vmatprep.subr.bf16.mxu0 0
  %286 = vmatpush2.bf16.msra.mxu0 0
  %287 = vmatprep.subr.bf16.mxu0 0
  %288 = vmatpush2.bf16.msra.mxu0 0
  %289 = vmatprep.subr.bf16.mxu0 0
  %290 = vmatpush2.bf16.msra.mxu0 0
  %291 = vmatprep.subr.bf16.mxu0 0
  %292 = vmatpush2.bf16.msra.mxu0 0
  %293 = vmatprep.subr.bf16.mxu0 0
  %294 = vmatpush2.bf16.msra.mxu0 0
  %295 = vmatprep.subr.bf16.mxu0 0
  %296 = vmatpush2.bf16.msra.mxu0 0
  %297 = vmatprep.mubr.bf16.mxu0 0
  %298 = vmatmul.mubr.bf16.gmra.mxu0 %v181
  %v299 = vpop.f32.mrf.mxu0
  %v300 = vadd.f32 %v78, %v299
  %v301 = vpop.f32.mrf.mxu0
  %v302 = vadd.f32 %v82, %v301
  %v303 = vpop.f32.mrf.mxu0
  %v304 = vpop.f32.mrf.mxu0
  %305 = vdwg.mxu0
  %306 = vmatprep.subr.bf16.mxu0 0
  %307 = vmatpush1.bf16.msra.mxu0 0
  %308 = vmatprep.subr.bf16.mxu0 0
  %309 = vmatpush1.bf16.msra.mxu0 0
  %310 = vmatprep.subr.bf16.mxu0 0
  %311 = vmatpush1.bf16.msra.mxu0 0
  %312 = vmatprep.subr.bf16.mxu0 0
  %313 = vmatpush1.bf16.msra.mxu0 0
  %314 = vmatprep.subr.bf16.mxu0 0
  %315 = vmatpush1.bf16.msra.mxu0 0
  %316 = vmatprep.subr.bf16.mxu0 0
  %317 = vmatpush1.bf16.msra.mxu0 0
  %318 = vmatprep.subr.bf16.mxu0 %v162
  %319 = vmatpush1.bf16.msra.mxu0 %v161
  %320 = vmatprep.subr.bf16.mxu0 %v154
  %321 = vmatpush1.bf16.msra.mxu0 %v153
  %322 = vmatprep.subr.bf16.mxu0 0
  %323 = vmatpush2.bf16.msra.mxu0 0
  %324 = vmatprep.subr.bf16.mxu0 0
  %325 = vmatpush2.bf16.msra.mxu0 0
  %326 = vmatprep.subr.bf16.mxu0 0
  %327 = vmatpush2.bf16.msra.mxu0 0
  %328 = vmatprep.subr.bf16.mxu0 0
  %329 = vmatpush2.bf16.msra.mxu0 0
  %330 = vmatprep.subr.bf16.mxu0 0
  %331 = vmatpush2.bf16.msra.mxu0 0
  %332 = vmatprep.subr.bf16.mxu0 0
  %333 = vmatpush2.bf16.msra.mxu0 0
  %334 = vmatprep.subr.bf16.mxu0 0
  %335 = vmatpush2.bf16.msra.mxu0 0
  %336 = vmatprep.subr.bf16.mxu0 0
  %337 = vmatpush2.bf16.msra.mxu0 0
  %338 = vmatprep.mubr.bf16.mxu0 0
  %339 = vmatmul.mubr.bf16.gmra.mxu0 %v181
  %v340 = vpop.f32.mrf.mxu0
  %v341 = vadd.f32 %v86, %v340
  %v342 = vpop.f32.mrf.mxu0
  %v343 = vadd.f32 %v90, %v342
  %v344 = vpop.f32.mrf.mxu0
  %v345 = vpop.f32.mrf.mxu0
  %346 = vdwg.mxu0
  %v347 = vld [vmem:[%s3] sm:$0xff]
  %v348 = vld [vmem:[%s4] sm:$0xff]
  %v349 = vadd.f32 %v218, %v220
  %v350 = vadd.f32 %v349, %v259
  %v351 = vadd.f32 %v350, %v261
  %v352 = vadd.f32 %v351, %v300
  %v353 = vadd.f32 %v352, %v302
  %v354 = vadd.f32 %v353, %v341
  %v355 = vadd.f32 %v354, %v343
  %356 = vadd.xlane.f32.xlu0 %v355
  %v357 = vpop.xlane.xlu0 %356
  %v358 = vrcp.pop 1024.0
  %v359 = vmul.f32 %v357, %v358
  %v360 = vsub.f32 %v218, %v359
  %v361 = vsub.f32 %v220, %v359
  %v362 = vsub.f32 %v259, %v359
  %v363 = vsub.f32 %v261, %v359
  %v364 = vsub.f32 %v300, %v359
  %v365 = vsub.f32 %v302, %v359
  %v366 = vsub.f32 %v341, %v359
  %v367 = vsub.f32 %v343, %v359
  %v368 = vmul.f32 %v360, %v360
  %v369 = vmul.f32 %v361, %v361
  %v370 = vmul.f32 %v362, %v362
  %v371 = vmul.f32 %v363, %v363
  %v372 = vmul.f32 %v364, %v364
  %v373 = vmul.f32 %v365, %v365
  %v374 = vmul.f32 %v366, %v366
  %v375 = vmul.f32 %v367, %v367
  %v376 = vadd.f32 %v368, %v369
  %v377 = vadd.f32 %v376, %v370
  %v378 = vadd.f32 %v377, %v371
  %v379 = vadd.f32 %v378, %v372
  %v380 = vadd.f32 %v379, %v373
  %v381 = vadd.f32 %v380, %v374
  %v382 = vadd.f32 %v381, %v375
  %383 = vadd.xlane.f32.xlu0 %v382
  %v384 = vpop.xlane.xlu0 %383
  %v385 = vmul.f32 %v384, %v358
  %v386 = vadd.f32 %v385, 1e-05
  %v387 = vrsqrt.pop %v386
  %v388 = vmul.f32 %v360, %v387
  %v389 = vmul.f32 %v361, %v387
  %v390 = vmul.f32 %v362, %v387
  %v391 = vmul.f32 %v363, %v387
  %v392 = vmul.f32 %v364, %v387
  %v393 = vmul.f32 %v365, %v387
  %v394 = vmul.f32 %v366, %v387
  %v395 = vmul.f32 %v367, %v387
  %v397 = vlaneseq
  %v398 = vshrl.u32 %v397, 7
  %v399 = vsub.s32 0, %v398
  %v400 = vrot.slane %v347, %v399
  %v401 = vlaneseq
  %v402 = vshrl.u32 %v401, 7
  %v403 = vsub.s32 1, %v402
  %v404 = vrot.slane %v347, %v403
  %v405 = vlaneseq
  %v406 = vshrl.u32 %v405, 7
  %v407 = vsub.s32 2, %v406
  %v408 = vrot.slane %v347, %v407
  %v409 = vlaneseq
  %v410 = vshrl.u32 %v409, 7
  %v411 = vsub.s32 3, %v410
  %v412 = vrot.slane %v347, %v411
  %v413 = vlaneseq
  %v414 = vshrl.u32 %v413, 7
  %v415 = vsub.s32 4, %v414
  %v416 = vrot.slane %v347, %v415
  %v417 = vlaneseq
  %v418 = vshrl.u32 %v417, 7
  %v419 = vsub.s32 5, %v418
  %v420 = vrot.slane %v347, %v419
  %v421 = vlaneseq
  %v422 = vshrl.u32 %v421, 7
  %v423 = vsub.s32 6, %v422
  %v424 = vrot.slane %v347, %v423
  %v425 = vlaneseq
  %v426 = vshrl.u32 %v425, 7
  %v427 = vsub.s32 7, %v426
  %v428 = vrot.slane %v347, %v427
  %v437 = vmul.f32 %v388, %v400
  %v438 = vmul.f32 %v389, %v404
  %v439 = vmul.f32 %v390, %v408
  %v440 = vmul.f32 %v391, %v412
  %v441 = vmul.f32 %v392, %v416
  %v442 = vmul.f32 %v393, %v420
  %v443 = vmul.f32 %v394, %v424
  %v444 = vmul.f32 %v395, %v428
  %v446 = vlaneseq
  %v447 = vshrl.u32 %v446, 7
  %v448 = vsub.s32 0, %v447
  %v449 = vrot.slane %v348, %v448
  %v450 = vlaneseq
  %v451 = vshrl.u32 %v450, 7
  %v452 = vsub.s32 1, %v451
  %v453 = vrot.slane %v348, %v452
  %v454 = vlaneseq
  %v455 = vshrl.u32 %v454, 7
  %v456 = vsub.s32 2, %v455
  %v457 = vrot.slane %v348, %v456
  %v458 = vlaneseq
  %v459 = vshrl.u32 %v458, 7
  %v460 = vsub.s32 3, %v459
  %v461 = vrot.slane %v348, %v460
  %v462 = vlaneseq
  %v463 = vshrl.u32 %v462, 7
  %v464 = vsub.s32 4, %v463
  %v465 = vrot.slane %v348, %v464
  %v466 = vlaneseq
  %v467 = vshrl.u32 %v466, 7
  %v468 = vsub.s32 5, %v467
  %v469 = vrot.slane %v348, %v468
  %v470 = vlaneseq
  %v471 = vshrl.u32 %v470, 7
  %v472 = vsub.s32 6, %v471
  %v473 = vrot.slane %v348, %v472
  %v474 = vlaneseq
  %v475 = vshrl.u32 %v474, 7
  %v476 = vsub.s32 7, %v475
  %v477 = vrot.slane %v348, %v476
  %v486 = vadd.f32 %v437, %v449
  %v487 = vadd.f32 %v438, %v453
  %v488 = vadd.f32 %v439, %v457
  %v489 = vadd.f32 %v440, %v461
  %v490 = vadd.f32 %v441, %v465
  %v491 = vadd.f32 %v442, %v469
  %v492 = vadd.f32 %v443, %v473
  %v493 = vadd.f32 %v444, %v477
  %v494 = vmax.f32 %v486, 0.0
  %v495 = vmax.f32 %v487, 0.0
  %v496 = vmax.f32 %v488, 0.0
  %v497 = vmax.f32 %v489, 0.0
  %v498 = vmax.f32 %v490, 0.0
  %v499 = vmax.f32 %v491, 0.0
  %v500 = vmax.f32 %v492, 0.0
  %v501 = vmax.f32 %v493, 0.0
  %v502 = vpack.c.bf16 %v494, %v494
  %v503 = vpack.c.bf16 %v495, %v495
  %v504 = vpack.c.bf16 %v496, %v496
  %v505 = vpack.c.bf16 %v497, %v497
  %v506 = vpack.c.bf16 %v498, %v498
  %v507 = vpack.c.bf16 %v499, %v499
  %v508 = vpack.c.bf16 %v500, %v500
  %v509 = vpack.c.bf16 %v501, %v501
  %v510 = vld [vmem:[%s5] sm:$0xff]
  %v511 = vld [vmem:[%s5 + $0x8] sm:$0xff]
  %v512 = vld [vmem:[%s5 + $0x10] sm:$0xff]
  %v513 = vld [vmem:[%s5 + $0x18] sm:$0xff]
  %v514 = vld [vmem:[%s5 + $0x20] sm:$0xff]
  %v515 = vld [vmem:[%s5 + $0x28] sm:$0xff]
  %v516 = vld [vmem:[%s5 + $0x30] sm:$0xff]
  %v517 = vld [vmem:[%s5 + $0x38] sm:$0xff]
  %v518 = vld [vmem:[%s5 + $0x40] sm:$0xff]
  %v519 = vld [vmem:[%s5 + $0x48] sm:$0xff]
  %v520 = vld [vmem:[%s5 + $0x50] sm:$0xff]
  %v521 = vld [vmem:[%s5 + $0x58] sm:$0xff]
  %v522 = vld [vmem:[%s5 + $0x60] sm:$0xff]
  %v523 = vld [vmem:[%s5 + $0x68] sm:$0xff]
  %v524 = vld [vmem:[%s5 + $0x70] sm:$0xff]
  %v525 = vld [vmem:[%s5 + $0x78] sm:$0xff]
  %v526 = vld [vmem:[%s5 + $0x80] sm:$0xff]
  %v527 = vld [vmem:[%s5 + $0x88] sm:$0xff]
  %v528 = vld [vmem:[%s5 + $0x90] sm:$0xff]
  %v529 = vld [vmem:[%s5 + $0x98] sm:$0xff]
  %v530 = vld [vmem:[%s5 + $0xa0] sm:$0xff]
  %v531 = vld [vmem:[%s5 + $0xa8] sm:$0xff]
  %v532 = vld [vmem:[%s5 + $0xb0] sm:$0xff]
  %v533 = vld [vmem:[%s5 + $0xb8] sm:$0xff]
  %v534 = vld [vmem:[%s5 + $0xc0] sm:$0xff]
  %v535 = vld [vmem:[%s5 + $0xc8] sm:$0xff]
  %v536 = vld [vmem:[%s5 + $0xd0] sm:$0xff]
  %v537 = vld [vmem:[%s5 + $0xd8] sm:$0xff]
  %v538 = vld [vmem:[%s5 + $0xe0] sm:$0xff]
  %v539 = vld [vmem:[%s5 + $0xe8] sm:$0xff]
  %v540 = vld [vmem:[%s5 + $0xf0] sm:$0xff]
  %v541 = vld [vmem:[%s5 + $0xf8] sm:$0xff]
  %v542 = vld [vmem:[%s5 + $0x100] sm:$0xff]
  %v543 = vld [vmem:[%s5 + $0x108] sm:$0xff]
  %v544 = vld [vmem:[%s5 + $0x110] sm:$0xff]
  %v545 = vld [vmem:[%s5 + $0x118] sm:$0xff]
  %v546 = vld [vmem:[%s5 + $0x120] sm:$0xff]
  %v547 = vld [vmem:[%s5 + $0x128] sm:$0xff]
  %v548 = vld [vmem:[%s5 + $0x130] sm:$0xff]
  %v549 = vld [vmem:[%s5 + $0x138] sm:$0xff]
  %v550 = vld [vmem:[%s5 + $0x140] sm:$0xff]
  %v551 = vld [vmem:[%s5 + $0x148] sm:$0xff]
  %v552 = vld [vmem:[%s5 + $0x150] sm:$0xff]
  %v553 = vld [vmem:[%s5 + $0x158] sm:$0xff]
  %v554 = vld [vmem:[%s5 + $0x160] sm:$0xff]
  %v555 = vld [vmem:[%s5 + $0x168] sm:$0xff]
  %v556 = vld [vmem:[%s5 + $0x170] sm:$0xff]
  %v557 = vld [vmem:[%s5 + $0x178] sm:$0xff]
  %v558 = vld [vmem:[%s5 + $0x180] sm:$0xff]
  %v559 = vld [vmem:[%s5 + $0x188] sm:$0xff]
  %v560 = vld [vmem:[%s5 + $0x190] sm:$0xff]
  %v561 = vld [vmem:[%s5 + $0x198] sm:$0xff]
  %v562 = vld [vmem:[%s5 + $0x1a0] sm:$0xff]
  %v563 = vld [vmem:[%s5 + $0x1a8] sm:$0xff]
  %v564 = vld [vmem:[%s5 + $0x1b0] sm:$0xff]
  %v565 = vld [vmem:[%s5 + $0x1b8] sm:$0xff]
  %v566 = vld [vmem:[%s5 + $0x1c0] sm:$0xff]
  %v567 = vld [vmem:[%s5 + $0x1c8] sm:$0xff]
  %v568 = vld [vmem:[%s5 + $0x1d0] sm:$0xff]
  %v569 = vld [vmem:[%s5 + $0x1d8] sm:$0xff]
  %v570 = vld [vmem:[%s5 + $0x1e0] sm:$0xff]
  %v571 = vld [vmem:[%s5 + $0x1e8] sm:$0xff]
  %v572 = vld [vmem:[%s5 + $0x1f0] sm:$0xff]
  %v573 = vld [vmem:[%s5 + $0x1f8] sm:$0xff]
  %v574 = vld [vmem:[%s5 + $0x200] sm:$0xff]
  %v575 = vld [vmem:[%s5 + $0x208] sm:$0xff]
  %v576 = vld [vmem:[%s5 + $0x210] sm:$0xff]
  %v577 = vld [vmem:[%s5 + $0x218] sm:$0xff]
  %v578 = vld [vmem:[%s5 + $0x220] sm:$0xff]
  %v579 = vld [vmem:[%s5 + $0x228] sm:$0xff]
  %v580 = vld [vmem:[%s5 + $0x230] sm:$0xff]
  %v581 = vld [vmem:[%s5 + $0x238] sm:$0xff]
  %v582 = vld [vmem:[%s5 + $0x240] sm:$0xff]
  %v583 = vld [vmem:[%s5 + $0x248] sm:$0xff]
  %v584 = vld [vmem:[%s5 + $0x250] sm:$0xff]
  %v585 = vld [vmem:[%s5 + $0x258] sm:$0xff]
  %v586 = vld [vmem:[%s5 + $0x260] sm:$0xff]
  %v587 = vld [vmem:[%s5 + $0x268] sm:$0xff]
  %v588 = vld [vmem:[%s5 + $0x270] sm:$0xff]
  %v589 = vld [vmem:[%s5 + $0x278] sm:$0xff]
  %v590 = vld [vmem:[%s5 + $0x280] sm:$0xff]
  %v591 = vld [vmem:[%s5 + $0x288] sm:$0xff]
  %v592 = vld [vmem:[%s5 + $0x290] sm:$0xff]
  %v593 = vld [vmem:[%s5 + $0x298] sm:$0xff]
  %v594 = vld [vmem:[%s5 + $0x2a0] sm:$0xff]
  %v595 = vld [vmem:[%s5 + $0x2a8] sm:$0xff]
  %v596 = vld [vmem:[%s5 + $0x2b0] sm:$0xff]
  %v597 = vld [vmem:[%s5 + $0x2b8] sm:$0xff]
  %v598 = vld [vmem:[%s5 + $0x2c0] sm:$0xff]
  %v599 = vld [vmem:[%s5 + $0x2c8] sm:$0xff]
  %v600 = vld [vmem:[%s5 + $0x2d0] sm:$0xff]
  %v601 = vld [vmem:[%s5 + $0x2d8] sm:$0xff]
  %v602 = vld [vmem:[%s5 + $0x2e0] sm:$0xff]
  %v603 = vld [vmem:[%s5 + $0x2e8] sm:$0xff]
  %v604 = vld [vmem:[%s5 + $0x2f0] sm:$0xff]
  %v605 = vld [vmem:[%s5 + $0x2f8] sm:$0xff]
  %v606 = vld [vmem:[%s5 + $0x300] sm:$0xff]
  %v607 = vld [vmem:[%s5 + $0x308] sm:$0xff]
  %v608 = vld [vmem:[%s5 + $0x310] sm:$0xff]
  %v609 = vld [vmem:[%s5 + $0x318] sm:$0xff]
  %v610 = vld [vmem:[%s5 + $0x320] sm:$0xff]
  %v611 = vld [vmem:[%s5 + $0x328] sm:$0xff]
  %v612 = vld [vmem:[%s5 + $0x330] sm:$0xff]
  %v613 = vld [vmem:[%s5 + $0x338] sm:$0xff]
  %v614 = vld [vmem:[%s5 + $0x340] sm:$0xff]
  %v615 = vld [vmem:[%s5 + $0x348] sm:$0xff]
  %v616 = vld [vmem:[%s5 + $0x350] sm:$0xff]
  %v617 = vld [vmem:[%s5 + $0x358] sm:$0xff]
  %v618 = vld [vmem:[%s5 + $0x360] sm:$0xff]
  %v619 = vld [vmem:[%s5 + $0x368] sm:$0xff]
  %v620 = vld [vmem:[%s5 + $0x370] sm:$0xff]
  %v621 = vld [vmem:[%s5 + $0x378] sm:$0xff]
  %v622 = vld [vmem:[%s5 + $0x380] sm:$0xff]
  %v623 = vld [vmem:[%s5 + $0x388] sm:$0xff]
  %v624 = vld [vmem:[%s5 + $0x390] sm:$0xff]
  %v625 = vld [vmem:[%s5 + $0x398] sm:$0xff]
  %v626 = vld [vmem:[%s5 + $0x3a0] sm:$0xff]
  %v627 = vld [vmem:[%s5 + $0x3a8] sm:$0xff]
  %v628 = vld [vmem:[%s5 + $0x3b0] sm:$0xff]
  %v629 = vld [vmem:[%s5 + $0x3b8] sm:$0xff]
  %v630 = vld [vmem:[%s5 + $0x3c0] sm:$0xff]
  %v631 = vld [vmem:[%s5 + $0x3c8] sm:$0xff]
  %v632 = vld [vmem:[%s5 + $0x3d0] sm:$0xff]
  %v633 = vld [vmem:[%s5 + $0x3d8] sm:$0xff]
  %v634 = vld [vmem:[%s5 + $0x3e0] sm:$0xff]
  %v635 = vld [vmem:[%s5 + $0x3e8] sm:$0xff]
  %v636 = vld [vmem:[%s5 + $0x3f0] sm:$0xff]
  %v637 = vld [vmem:[%s5 + $0x3f8] sm:$0xff]
  %v638 = vld [vmem:[%s6] sm:$0x3]
  %v640 = vlaneseq
  %v641 = vshrl.u32 %v640, 7
  %v642 = vsub.s32 0, %v641
  %v643 = vrot.slane %v638, %v642
  %v644 = vlaneseq
  %v645 = vshrl.u32 %v644, 7
  %v646 = vsub.s32 1, %v645
  %v647 = vrot.slane %v638, %v646
  %v778 = vunpack.c.l.b16 %v510
  %v779 = vunpack.c.h.b16 %v510
  %v780 = vunpack.c.l.b16 %v511
  %v781 = vunpack.c.h.b16 %v511
  %v782 = vunpack.c.l.b16 %v512
  %v783 = vunpack.c.h.b16 %v512
  %v784 = vunpack.c.l.b16 %v513
  %v785 = vunpack.c.h.b16 %v513
  %v786 = vunpack.c.l.b16 %v514
  %v787 = vunpack.c.h.b16 %v514
  %v788 = vunpack.c.l.b16 %v515
  %v789 = vunpack.c.h.b16 %v515
  %v790 = vunpack.c.l.b16 %v516
  %v791 = vunpack.c.h.b16 %v516
  %v792 = vunpack.c.l.b16 %v517
  %v793 = vunpack.c.h.b16 %v517
  %v794 = vunpack.c.l.b16 %v518
  %v795 = vunpack.c.h.b16 %v518
  %v796 = vunpack.c.l.b16 %v519
  %v797 = vunpack.c.h.b16 %v519
  %v798 = vunpack.c.l.b16 %v520
  %v799 = vunpack.c.h.b16 %v520
  %v800 = vunpack.c.l.b16 %v521
  %v801 = vunpack.c.h.b16 %v521
  %v802 = vunpack.c.l.b16 %v522
  %v803 = vunpack.c.h.b16 %v522
  %v804 = vunpack.c.l.b16 %v523
  %v805 = vunpack.c.h.b16 %v523
  %v806 = vunpack.c.l.b16 %v524
  %v807 = vunpack.c.h.b16 %v524
  %v808 = vunpack.c.l.b16 %v525
  %v809 = vunpack.c.h.b16 %v525
  %v810 = vunpack.c.l.b16 %v526
  %v811 = vunpack.c.h.b16 %v526
  %v812 = vunpack.c.l.b16 %v527
  %v813 = vunpack.c.h.b16 %v527
  %v814 = vunpack.c.l.b16 %v528
  %v815 = vunpack.c.h.b16 %v528
  %v816 = vunpack.c.l.b16 %v529
  %v817 = vunpack.c.h.b16 %v529
  %v818 = vunpack.c.l.b16 %v530
  %v819 = vunpack.c.h.b16 %v530
  %v820 = vunpack.c.l.b16 %v531
  %v821 = vunpack.c.h.b16 %v531
  %v822 = vunpack.c.l.b16 %v532
  %v823 = vunpack.c.h.b16 %v532
  %v824 = vunpack.c.l.b16 %v533
  %v825 = vunpack.c.h.b16 %v533
  %v826 = vunpack.c.l.b16 %v534
  %v827 = vunpack.c.h.b16 %v534
  %v828 = vunpack.c.l.b16 %v535
  %v829 = vunpack.c.h.b16 %v535
  %v830 = vunpack.c.l.b16 %v536
  %v831 = vunpack.c.h.b16 %v536
  %v832 = vunpack.c.l.b16 %v537
  %v833 = vunpack.c.h.b16 %v537
  %v834 = vunpack.c.l.b16 %v538
  %v835 = vunpack.c.h.b16 %v538
  %v836 = vunpack.c.l.b16 %v539
  %v837 = vunpack.c.h.b16 %v539
  %v838 = vunpack.c.l.b16 %v540
  %v839 = vunpack.c.h.b16 %v540
  %v840 = vunpack.c.l.b16 %v541
  %v841 = vunpack.c.h.b16 %v541
  %v842 = vunpack.c.l.b16 %v542
  %v843 = vunpack.c.h.b16 %v542
  %v844 = vunpack.c.l.b16 %v543
  %v845 = vunpack.c.h.b16 %v543
  %v846 = vunpack.c.l.b16 %v544
  %v847 = vunpack.c.h.b16 %v544
  %v848 = vunpack.c.l.b16 %v545
  %v849 = vunpack.c.h.b16 %v545
  %v850 = vunpack.c.l.b16 %v546
  %v851 = vunpack.c.h.b16 %v546
  %v852 = vunpack.c.l.b16 %v547
  %v853 = vunpack.c.h.b16 %v547
  %v854 = vunpack.c.l.b16 %v548
  %v855 = vunpack.c.h.b16 %v548
  %v856 = vunpack.c.l.b16 %v549
  %v857 = vunpack.c.h.b16 %v549
  %v858 = vunpack.c.l.b16 %v550
  %v859 = vunpack.c.h.b16 %v550
  %v860 = vunpack.c.l.b16 %v551
  %v861 = vunpack.c.h.b16 %v551
  %v862 = vunpack.c.l.b16 %v552
  %v863 = vunpack.c.h.b16 %v552
  %v864 = vunpack.c.l.b16 %v553
  %v865 = vunpack.c.h.b16 %v553
  %v866 = vunpack.c.l.b16 %v554
  %v867 = vunpack.c.h.b16 %v554
  %v868 = vunpack.c.l.b16 %v555
  %v869 = vunpack.c.h.b16 %v555
  %v870 = vunpack.c.l.b16 %v556
  %v871 = vunpack.c.h.b16 %v556
  %v872 = vunpack.c.l.b16 %v557
  %v873 = vunpack.c.h.b16 %v557
  %v874 = vunpack.c.l.b16 %v558
  %v875 = vunpack.c.h.b16 %v558
  %v876 = vunpack.c.l.b16 %v559
  %v877 = vunpack.c.h.b16 %v559
  %v878 = vunpack.c.l.b16 %v560
  %v879 = vunpack.c.h.b16 %v560
  %v880 = vunpack.c.l.b16 %v561
  %v881 = vunpack.c.h.b16 %v561
  %v882 = vunpack.c.l.b16 %v562
  %v883 = vunpack.c.h.b16 %v562
  %v884 = vunpack.c.l.b16 %v563
  %v885 = vunpack.c.h.b16 %v563
  %v886 = vunpack.c.l.b16 %v564
  %v887 = vunpack.c.h.b16 %v564
  %v888 = vunpack.c.l.b16 %v565
  %v889 = vunpack.c.h.b16 %v565
  %v890 = vunpack.c.l.b16 %v566
  %v891 = vunpack.c.h.b16 %v566
  %v892 = vunpack.c.l.b16 %v567
  %v893 = vunpack.c.h.b16 %v567
  %v894 = vunpack.c.l.b16 %v568
  %v895 = vunpack.c.h.b16 %v568
  %v896 = vunpack.c.l.b16 %v569
  %v897 = vunpack.c.h.b16 %v569
  %v898 = vunpack.c.l.b16 %v570
  %v899 = vunpack.c.h.b16 %v570
  %v900 = vunpack.c.l.b16 %v571
  %v901 = vunpack.c.h.b16 %v571
  %v902 = vunpack.c.l.b16 %v572
  %v903 = vunpack.c.h.b16 %v572
  %v904 = vunpack.c.l.b16 %v573
  %v905 = vunpack.c.h.b16 %v573
  %v906 = vunpack.c.l.b16 %v574
  %v907 = vunpack.c.h.b16 %v574
  %v908 = vunpack.c.l.b16 %v575
  %v909 = vunpack.c.h.b16 %v575
  %v910 = vunpack.c.l.b16 %v576
  %v911 = vunpack.c.h.b16 %v576
  %v912 = vunpack.c.l.b16 %v577
  %v913 = vunpack.c.h.b16 %v577
  %v914 = vunpack.c.l.b16 %v578
  %v915 = vunpack.c.h.b16 %v578
  %v916 = vunpack.c.l.b16 %v579
  %v917 = vunpack.c.h.b16 %v579
  %v918 = vunpack.c.l.b16 %v580
  %v919 = vunpack.c.h.b16 %v580
  %v920 = vunpack.c.l.b16 %v581
  %v921 = vunpack.c.h.b16 %v581
  %v922 = vunpack.c.l.b16 %v582
  %v923 = vunpack.c.h.b16 %v582
  %v924 = vunpack.c.l.b16 %v583
  %v925 = vunpack.c.h.b16 %v583
  %v926 = vunpack.c.l.b16 %v584
  %v927 = vunpack.c.h.b16 %v584
  %v928 = vunpack.c.l.b16 %v585
  %v929 = vunpack.c.h.b16 %v585
  %v930 = vunpack.c.l.b16 %v586
  %v931 = vunpack.c.h.b16 %v586
  %v932 = vunpack.c.l.b16 %v587
  %v933 = vunpack.c.h.b16 %v587
  %v934 = vunpack.c.l.b16 %v588
  %v935 = vunpack.c.h.b16 %v588
  %v936 = vunpack.c.l.b16 %v589
  %v937 = vunpack.c.h.b16 %v589
  %v938 = vunpack.c.l.b16 %v590
  %v939 = vunpack.c.h.b16 %v590
  %v940 = vunpack.c.l.b16 %v591
  %v941 = vunpack.c.h.b16 %v591
  %v942 = vunpack.c.l.b16 %v592
  %v943 = vunpack.c.h.b16 %v592
  %v944 = vunpack.c.l.b16 %v593
  %v945 = vunpack.c.h.b16 %v593
  %v946 = vunpack.c.l.b16 %v594
  %v947 = vunpack.c.h.b16 %v594
  %v948 = vunpack.c.l.b16 %v595
  %v949 = vunpack.c.h.b16 %v595
  %v950 = vunpack.c.l.b16 %v596
  %v951 = vunpack.c.h.b16 %v596
  %v952 = vunpack.c.l.b16 %v597
  %v953 = vunpack.c.h.b16 %v597
  %v954 = vunpack.c.l.b16 %v598
  %v955 = vunpack.c.h.b16 %v598
  %v956 = vunpack.c.l.b16 %v599
  %v957 = vunpack.c.h.b16 %v599
  %v958 = vunpack.c.l.b16 %v600
  %v959 = vunpack.c.h.b16 %v600
  %v960 = vunpack.c.l.b16 %v601
  %v961 = vunpack.c.h.b16 %v601
  %v962 = vunpack.c.l.b16 %v602
  %v963 = vunpack.c.h.b16 %v602
  %v964 = vunpack.c.l.b16 %v603
  %v965 = vunpack.c.h.b16 %v603
  %v966 = vunpack.c.l.b16 %v604
  %v967 = vunpack.c.h.b16 %v604
  %v968 = vunpack.c.l.b16 %v605
  %v969 = vunpack.c.h.b16 %v605
  %v970 = vunpack.c.l.b16 %v606
  %v971 = vunpack.c.h.b16 %v606
  %v972 = vunpack.c.l.b16 %v607
  %v973 = vunpack.c.h.b16 %v607
  %v974 = vunpack.c.l.b16 %v608
  %v975 = vunpack.c.h.b16 %v608
  %v976 = vunpack.c.l.b16 %v609
  %v977 = vunpack.c.h.b16 %v609
  %v978 = vunpack.c.l.b16 %v610
  %v979 = vunpack.c.h.b16 %v610
  %v980 = vunpack.c.l.b16 %v611
  %v981 = vunpack.c.h.b16 %v611
  %v982 = vunpack.c.l.b16 %v612
  %v983 = vunpack.c.h.b16 %v612
  %v984 = vunpack.c.l.b16 %v613
  %v985 = vunpack.c.h.b16 %v613
  %v986 = vunpack.c.l.b16 %v614
  %v987 = vunpack.c.h.b16 %v614
  %v988 = vunpack.c.l.b16 %v615
  %v989 = vunpack.c.h.b16 %v615
  %v990 = vunpack.c.l.b16 %v616
  %v991 = vunpack.c.h.b16 %v616
  %v992 = vunpack.c.l.b16 %v617
  %v993 = vunpack.c.h.b16 %v617
  %v994 = vunpack.c.l.b16 %v618
  %v995 = vunpack.c.h.b16 %v618
  %v996 = vunpack.c.l.b16 %v619
  %v997 = vunpack.c.h.b16 %v619
  %v998 = vunpack.c.l.b16 %v620
  %v999 = vunpack.c.h.b16 %v620
  %v1000 = vunpack.c.l.b16 %v621
  %v1001 = vunpack.c.h.b16 %v621
  %v1002 = vunpack.c.l.b16 %v622
  %v1003 = vunpack.c.h.b16 %v622
  %v1004 = vunpack.c.l.b16 %v623
  %v1005 = vunpack.c.h.b16 %v623
  %v1006 = vunpack.c.l.b16 %v624
  %v1007 = vunpack.c.h.b16 %v624
  %v1008 = vunpack.c.l.b16 %v625
  %v1009 = vunpack.c.h.b16 %v625
  %v1010 = vunpack.c.l.b16 %v626
  %v1011 = vunpack.c.h.b16 %v626
  %v1012 = vunpack.c.l.b16 %v627
  %v1013 = vunpack.c.h.b16 %v627
  %v1014 = vunpack.c.l.b16 %v628
  %v1015 = vunpack.c.h.b16 %v628
  %v1016 = vunpack.c.l.b16 %v629
  %v1017 = vunpack.c.h.b16 %v629
  %v1018 = vunpack.c.l.b16 %v630
  %v1019 = vunpack.c.h.b16 %v630
  %v1020 = vunpack.c.l.b16 %v631
  %v1021 = vunpack.c.h.b16 %v631
  %v1022 = vunpack.c.l.b16 %v632
  %v1023 = vunpack.c.h.b16 %v632
  %v1024 = vunpack.c.l.b16 %v633
  %v1025 = vunpack.c.h.b16 %v633
  %v1026 = vunpack.c.l.b16 %v634
  %v1027 = vunpack.c.h.b16 %v634
  %v1028 = vunpack.c.l.b16 %v635
  %v1029 = vunpack.c.h.b16 %v635
  %v1030 = vunpack.c.l.b16 %v636
  %v1031 = vunpack.c.h.b16 %v636
  %v1032 = vunpack.c.l.b16 %v637
  %v1033 = vunpack.c.h.b16 %v637
  %v1034 = vpack.c.b16 %v780, %v778
  %v1035 = vpack.c.b16 %v781, %v779
  %v1036 = vpack.c.b16 %v784, %v782
  %v1037 = vpack.c.b16 %v785, %v783
  %v1038 = vpack.c.b16 %v788, %v786
  %v1039 = vpack.c.b16 %v789, %v787
  %v1040 = vpack.c.b16 %v792, %v790
  %v1041 = vpack.c.b16 %v793, %v791
  %v1042 = vpack.c.b16 %v796, %v794
  %v1043 = vpack.c.b16 %v797, %v795
  %v1044 = vpack.c.b16 %v800, %v798
  %v1045 = vpack.c.b16 %v801, %v799
  %v1046 = vpack.c.b16 %v804, %v802
  %v1047 = vpack.c.b16 %v805, %v803
  %v1048 = vpack.c.b16 %v808, %v806
  %v1049 = vpack.c.b16 %v809, %v807
  %v1050 = vpack.c.b16 %v812, %v810
  %v1051 = vpack.c.b16 %v813, %v811
  %v1052 = vpack.c.b16 %v816, %v814
  %v1053 = vpack.c.b16 %v817, %v815
  %v1054 = vpack.c.b16 %v820, %v818
  %v1055 = vpack.c.b16 %v821, %v819
  %v1056 = vpack.c.b16 %v824, %v822
  %v1057 = vpack.c.b16 %v825, %v823
  %v1058 = vpack.c.b16 %v828, %v826
  %v1059 = vpack.c.b16 %v829, %v827
  %v1060 = vpack.c.b16 %v832, %v830
  %v1061 = vpack.c.b16 %v833, %v831
  %v1062 = vpack.c.b16 %v836, %v834
  %v1063 = vpack.c.b16 %v837, %v835
  %v1064 = vpack.c.b16 %v840, %v838
  %v1065 = vpack.c.b16 %v841, %v839
  %v1066 = vpack.c.b16 %v844, %v842
  %v1067 = vpack.c.b16 %v845, %v843
  %v1068 = vpack.c.b16 %v848, %v846
  %v1069 = vpack.c.b16 %v849, %v847
  %v1070 = vpack.c.b16 %v852, %v850
  %v1071 = vpack.c.b16 %v853, %v851
  %v1072 = vpack.c.b16 %v856, %v854
  %v1073 = vpack.c.b16 %v857, %v855
  %v1074 = vpack.c.b16 %v860, %v858
  %v1075 = vpack.c.b16 %v861, %v859
  %v1076 = vpack.c.b16 %v864, %v862
  %v1077 = vpack.c.b16 %v865, %v863
  %v1078 = vpack.c.b16 %v868, %v866
  %v1079 = vpack.c.b16 %v869, %v867
  %v1080 = vpack.c.b16 %v872, %v870
  %v1081 = vpack.c.b16 %v873, %v871
  %v1082 = vpack.c.b16 %v876, %v874
  %v1083 = vpack.c.b16 %v877, %v875
  %v1084 = vpack.c.b16 %v880, %v878
  %v1085 = vpack.c.b16 %v881, %v879
  %v1086 = vpack.c.b16 %v884, %v882
  %v1087 = vpack.c.b16 %v885, %v883
  %v1088 = vpack.c.b16 %v888, %v886
  %v1089 = vpack.c.b16 %v889, %v887
  %v1090 = vpack.c.b16 %v892, %v890
  %v1091 = vpack.c.b16 %v893, %v891
  %v1092 = vpack.c.b16 %v896, %v894
  %v1093 = vpack.c.b16 %v897, %v895
  %v1094 = vpack.c.b16 %v900, %v898
  %v1095 = vpack.c.b16 %v901, %v899
  %v1096 = vpack.c.b16 %v904, %v902
  %v1097 = vpack.c.b16 %v905, %v903
  %v1098 = vpack.c.b16 %v908, %v906
  %v1099 = vpack.c.b16 %v909, %v907
  %v1100 = vpack.c.b16 %v912, %v910
  %v1101 = vpack.c.b16 %v913, %v911
  %v1102 = vpack.c.b16 %v916, %v914
  %v1103 = vpack.c.b16 %v917, %v915
  %v1104 = vpack.c.b16 %v920, %v918
  %v1105 = vpack.c.b16 %v921, %v919
  %v1106 = vpack.c.b16 %v924, %v922
  %v1107 = vpack.c.b16 %v925, %v923
  %v1108 = vpack.c.b16 %v928, %v926
  %v1109 = vpack.c.b16 %v929, %v927
  %v1110 = vpack.c.b16 %v932, %v930
  %v1111 = vpack.c.b16 %v933, %v931
  %v1112 = vpack.c.b16 %v936, %v934
  %v1113 = vpack.c.b16 %v937, %v935
  %v1114 = vpack.c.b16 %v940, %v938
  %v1115 = vpack.c.b16 %v941, %v939
  %v1116 = vpack.c.b16 %v944, %v942
  %v1117 = vpack.c.b16 %v945, %v943
  %v1118 = vpack.c.b16 %v948, %v946
  %v1119 = vpack.c.b16 %v949, %v947
  %v1120 = vpack.c.b16 %v952, %v950
  %v1121 = vpack.c.b16 %v953, %v951
  %v1122 = vpack.c.b16 %v956, %v954
  %v1123 = vpack.c.b16 %v957, %v955
  %v1124 = vpack.c.b16 %v960, %v958
  %v1125 = vpack.c.b16 %v961, %v959
  %v1126 = vpack.c.b16 %v964, %v962
  %v1127 = vpack.c.b16 %v965, %v963
  %v1128 = vpack.c.b16 %v968, %v966
  %v1129 = vpack.c.b16 %v969, %v967
  %v1130 = vpack.c.b16 %v972, %v970
  %v1131 = vpack.c.b16 %v973, %v971
  %v1132 = vpack.c.b16 %v976, %v974
  %v1133 = vpack.c.b16 %v977, %v975
  %v1134 = vpack.c.b16 %v980, %v978
  %v1135 = vpack.c.b16 %v981, %v979
  %v1136 = vpack.c.b16 %v984, %v982
  %v1137 = vpack.c.b16 %v985, %v983
  %v1138 = vpack.c.b16 %v988, %v986
  %v1139 = vpack.c.b16 %v989, %v987
  %v1140 = vpack.c.b16 %v992, %v990
  %v1141 = vpack.c.b16 %v993, %v991
  %v1142 = vpack.c.b16 %v996, %v994
  %v1143 = vpack.c.b16 %v997, %v995
  %v1144 = vpack.c.b16 %v1000, %v998
  %v1145 = vpack.c.b16 %v1001, %v999
  %v1146 = vpack.c.b16 %v1004, %v1002
  %v1147 = vpack.c.b16 %v1005, %v1003
  %v1148 = vpack.c.b16 %v1008, %v1006
  %v1149 = vpack.c.b16 %v1009, %v1007
  %v1150 = vpack.c.b16 %v1012, %v1010
  %v1151 = vpack.c.b16 %v1013, %v1011
  %v1152 = vpack.c.b16 %v1016, %v1014
  %v1153 = vpack.c.b16 %v1017, %v1015
  %v1154 = vpack.c.b16 %v1020, %v1018
  %v1155 = vpack.c.b16 %v1021, %v1019
  %v1156 = vpack.c.b16 %v1024, %v1022
  %v1157 = vpack.c.b16 %v1025, %v1023
  %v1158 = vpack.c.b16 %v1028, %v1026
  %v1159 = vpack.c.b16 %v1029, %v1027
  %v1160 = vpack.c.b16 %v1032, %v1030
  %v1161 = vpack.c.b16 %v1033, %v1031
  %1290 = vmatprep.subr.bf16.mxu0 %v1049
  %1291 = vmatpush1.bf16.msra.mxu0 %v1048
  %1292 = vmatprep.subr.bf16.mxu0 %v1047
  %1293 = vmatpush1.bf16.msra.mxu0 %v1046
  %1294 = vmatprep.subr.bf16.mxu0 %v1045
  %1295 = vmatpush1.bf16.msra.mxu0 %v1044
  %1296 = vmatprep.subr.bf16.mxu0 %v1043
  %1297 = vmatpush1.bf16.msra.mxu0 %v1042
  %1298 = vmatprep.subr.bf16.mxu0 %v1041
  %1299 = vmatpush1.bf16.msra.mxu0 %v1040
  %1300 = vmatprep.subr.bf16.mxu0 %v1039
  %1301 = vmatpush1.bf16.msra.mxu0 %v1038
  %1302 = vmatprep.subr.bf16.mxu0 %v1037
  %1303 = vmatpush1.bf16.msra.mxu0 %v1036
  %1304 = vmatprep.subr.bf16.mxu0 %v1035
  %1305 = vmatpush1.bf16.msra.mxu0 %v1034
  %1306 = vmatprep.subr.bf16.mxu0 %v1065
  %1307 = vmatpush2.bf16.msra.mxu0 %v1064
  %1308 = vmatprep.subr.bf16.mxu0 %v1063
  %1309 = vmatpush2.bf16.msra.mxu0 %v1062
  %1310 = vmatprep.subr.bf16.mxu0 %v1061
  %1311 = vmatpush2.bf16.msra.mxu0 %v1060
  %1312 = vmatprep.subr.bf16.mxu0 %v1059
  %1313 = vmatpush2.bf16.msra.mxu0 %v1058
  %1314 = vmatprep.subr.bf16.mxu0 %v1057
  %1315 = vmatpush2.bf16.msra.mxu0 %v1056
  %1316 = vmatprep.subr.bf16.mxu0 %v1055
  %1317 = vmatpush2.bf16.msra.mxu0 %v1054
  %1318 = vmatprep.subr.bf16.mxu0 %v1053
  %1319 = vmatpush2.bf16.msra.mxu0 %v1052
  %1320 = vmatprep.subr.bf16.mxu0 %v1051
  %1321 = vmatpush2.bf16.msra.mxu0 %v1050
  %1322 = vmatprep.mubr.bf16.mxu0 %v503
  %1323 = vmatmul.mubr.bf16.gmra.mxu0 %v502
  %v1324 = vpop.f32.mrf.mxu0
  %v1325 = vadd.f32 %v643, %v1324
  %v1326 = vpop.f32.mrf.mxu0
  %v1327 = vadd.f32 %v647, %v1326
  %v1328 = vpop.f32.mrf.mxu0
  %v1329 = vpop.f32.mrf.mxu0
  %1330 = vdwg.mxu0
  %1331 = vmatprep.subr.bf16.mxu0 %v1081
  %1332 = vmatpush1.bf16.msra.mxu0 %v1080
  %1333 = vmatprep.subr.bf16.mxu0 %v1079
  %1334 = vmatpush1.bf16.msra.mxu0 %v1078
  %1335 = vmatprep.subr.bf16.mxu0 %v1077
  %1336 = vmatpush1.bf16.msra.mxu0 %v1076
  %1337 = vmatprep.subr.bf16.mxu0 %v1075
  %1338 = vmatpush1.bf16.msra.mxu0 %v1074
  %1339 = vmatprep.subr.bf16.mxu0 %v1073
  %1340 = vmatpush1.bf16.msra.mxu0 %v1072
  %1341 = vmatprep.subr.bf16.mxu0 %v1071
  %1342 = vmatpush1.bf16.msra.mxu0 %v1070
  %1343 = vmatprep.subr.bf16.mxu0 %v1069
  %1344 = vmatpush1.bf16.msra.mxu0 %v1068
  %1345 = vmatprep.subr.bf16.mxu0 %v1067
  %1346 = vmatpush1.bf16.msra.mxu0 %v1066
  %1347 = vmatprep.subr.bf16.mxu0 %v1097
  %1348 = vmatpush2.bf16.msra.mxu0 %v1096
  %1349 = vmatprep.subr.bf16.mxu0 %v1095
  %1350 = vmatpush2.bf16.msra.mxu0 %v1094
  %1351 = vmatprep.subr.bf16.mxu0 %v1093
  %1352 = vmatpush2.bf16.msra.mxu0 %v1092
  %1353 = vmatprep.subr.bf16.mxu0 %v1091
  %1354 = vmatpush2.bf16.msra.mxu0 %v1090
  %1355 = vmatprep.subr.bf16.mxu0 %v1089
  %1356 = vmatpush2.bf16.msra.mxu0 %v1088
  %1357 = vmatprep.subr.bf16.mxu0 %v1087
  %1358 = vmatpush2.bf16.msra.mxu0 %v1086
  %1359 = vmatprep.subr.bf16.mxu0 %v1085
  %1360 = vmatpush2.bf16.msra.mxu0 %v1084
  %1361 = vmatprep.subr.bf16.mxu0 %v1083
  %1362 = vmatpush2.bf16.msra.mxu0 %v1082
  %1363 = vmatprep.mubr.bf16.mxu0 %v505
  %1364 = vmatmul.mubr.bf16.gmra.mxu0 %v504
  %v1365 = vpop.f32.mrf.mxu0
  %v1366 = vadd.f32 %v1325, %v1365
  %v1367 = vpop.f32.mrf.mxu0
  %v1368 = vadd.f32 %v1327, %v1367
  %v1369 = vpop.f32.mrf.mxu0
  %v1370 = vpop.f32.mrf.mxu0
  %1371 = vdwg.mxu0
  %1372 = vmatprep.subr.bf16.mxu0 %v1113
  %1373 = vmatpush1.bf16.msra.mxu0 %v1112
  %1374 = vmatprep.subr.bf16.mxu0 %v1111
  %1375 = vmatpush1.bf16.msra.mxu0 %v1110
  %1376 = vmatprep.subr.bf16.mxu0 %v1109
  %1377 = vmatpush1.bf16.msra.mxu0 %v1108
  %1378 = vmatprep.subr.bf16.mxu0 %v1107
  %1379 = vmatpush1.bf16.msra.mxu0 %v1106
  %1380 = vmatprep.subr.bf16.mxu0 %v1105
  %1381 = vmatpush1.bf16.msra.mxu0 %v1104
  %1382 = vmatprep.subr.bf16.mxu0 %v1103
  %1383 = vmatpush1.bf16.msra.mxu0 %v1102
  %1384 = vmatprep.subr.bf16.mxu0 %v1101
  %1385 = vmatpush1.bf16.msra.mxu0 %v1100
  %1386 = vmatprep.subr.bf16.mxu0 %v1099
  %1387 = vmatpush1.bf16.msra.mxu0 %v1098
  %1388 = vmatprep.subr.bf16.mxu0 %v1129
  %1389 = vmatpush2.bf16.msra.mxu0 %v1128
  %1390 = vmatprep.subr.bf16.mxu0 %v1127
  %1391 = vmatpush2.bf16.msra.mxu0 %v1126
  %1392 = vmatprep.subr.bf16.mxu0 %v1125
  %1393 = vmatpush2.bf16.msra.mxu0 %v1124
  %1394 = vmatprep.subr.bf16.mxu0 %v1123
  %1395 = vmatpush2.bf16.msra.mxu0 %v1122
  %1396 = vmatprep.subr.bf16.mxu0 %v1121
  %1397 = vmatpush2.bf16.msra.mxu0 %v1120
  %1398 = vmatprep.subr.bf16.mxu0 %v1119
  %1399 = vmatpush2.bf16.msra.mxu0 %v1118
  %1400 = vmatprep.subr.bf16.mxu0 %v1117
  %1401 = vmatpush2.bf16.msra.mxu0 %v1116
  %1402 = vmatprep.subr.bf16.mxu0 %v1115
  %1403 = vmatpush2.bf16.msra.mxu0 %v1114
  %1404 = vmatprep.mubr.bf16.mxu0 %v507
  %1405 = vmatmul.mubr.bf16.gmra.mxu0 %v506
  %v1406 = vpop.f32.mrf.mxu0
  %v1407 = vadd.f32 %v1366, %v1406
  %v1408 = vpop.f32.mrf.mxu0
  %v1409 = vadd.f32 %v1368, %v1408
  %v1410 = vpop.f32.mrf.mxu0
  %v1411 = vpop.f32.mrf.mxu0
  %1412 = vdwg.mxu0
  %1413 = vmatprep.subr.bf16.mxu0 %v1145
  %1414 = vmatpush1.bf16.msra.mxu0 %v1144
  %1415 = vmatprep.subr.bf16.mxu0 %v1143
  %1416 = vmatpush1.bf16.msra.mxu0 %v1142
  %1417 = vmatprep.subr.bf16.mxu0 %v1141
  %1418 = vmatpush1.bf16.msra.mxu0 %v1140
  %1419 = vmatprep.subr.bf16.mxu0 %v1139
  %1420 = vmatpush1.bf16.msra.mxu0 %v1138
  %1421 = vmatprep.subr.bf16.mxu0 %v1137
  %1422 = vmatpush1.bf16.msra.mxu0 %v1136
  %1423 = vmatprep.subr.bf16.mxu0 %v1135
  %1424 = vmatpush1.bf16.msra.mxu0 %v1134
  %1425 = vmatprep.subr.bf16.mxu0 %v1133
  %1426 = vmatpush1.bf16.msra.mxu0 %v1132
  %1427 = vmatprep.subr.bf16.mxu0 %v1131
  %1428 = vmatpush1.bf16.msra.mxu0 %v1130
  %1429 = vmatprep.subr.bf16.mxu0 %v1161
  %1430 = vmatpush2.bf16.msra.mxu0 %v1160
  %1431 = vmatprep.subr.bf16.mxu0 %v1159
  %1432 = vmatpush2.bf16.msra.mxu0 %v1158
  %1433 = vmatprep.subr.bf16.mxu0 %v1157
  %1434 = vmatpush2.bf16.msra.mxu0 %v1156
  %1435 = vmatprep.subr.bf16.mxu0 %v1155
  %1436 = vmatpush2.bf16.msra.mxu0 %v1154
  %1437 = vmatprep.subr.bf16.mxu0 %v1153
  %1438 = vmatpush2.bf16.msra.mxu0 %v1152
  %1439 = vmatprep.subr.bf16.mxu0 %v1151
  %1440 = vmatpush2.bf16.msra.mxu0 %v1150
  %1441 = vmatprep.subr.bf16.mxu0 %v1149
  %1442 = vmatpush2.bf16.msra.mxu0 %v1148
  %1443 = vmatprep.subr.bf16.mxu0 %v1147
  %1444 = vmatpush2.bf16.msra.mxu0 %v1146
  %1445 = vmatprep.mubr.bf16.mxu0 %v509
  %1446 = vmatmul.mubr.bf16.gmra.mxu0 %v508
  %v1447 = vpop.f32.mrf.mxu0
  %v1448 = vadd.f32 %v1407, %v1447
  %v1449 = vpop.f32.mrf.mxu0
  %v1450 = vadd.f32 %v1409, %v1449
  %v1451 = vpop.f32.mrf.mxu0
  %v1452 = vpop.f32.mrf.mxu0
  %1453 = vdwg.mxu0
  %v1454 = vld [vmem:[%s7] sm:$0x3]
  %v1455 = vld [vmem:[%s8] sm:$0x3]
  %v1456 = vadd.f32 %v1448, %v1450
  %1457 = vadd.xlane.f32.xlu0 %v1456
  %v1458 = vpop.xlane.xlu0 %1457
  %v1459 = vrcp.pop 256.0
  %v1460 = vmul.f32 %v1458, %v1459
  %v1461 = vsub.f32 %v1448, %v1460
  %v1462 = vsub.f32 %v1450, %v1460
  %v1463 = vmul.f32 %v1461, %v1461
  %v1464 = vmul.f32 %v1462, %v1462
  %v1465 = vadd.f32 %v1463, %v1464
  %1466 = vadd.xlane.f32.xlu0 %v1465
  %v1467 = vpop.xlane.xlu0 %1466
  %v1468 = vmul.f32 %v1467, %v1459
  %v1469 = vadd.f32 %v1468, 1e-05
  %v1470 = vrsqrt.pop %v1469
  %v1471 = vmul.f32 %v1461, %v1470
  %v1472 = vmul.f32 %v1462, %v1470
  %v1474 = vlaneseq
  %v1475 = vshrl.u32 %v1474, 7
  %v1476 = vsub.s32 0, %v1475
  %v1477 = vrot.slane %v1454, %v1476
  %v1478 = vlaneseq
  %v1479 = vshrl.u32 %v1478, 7
  %v1480 = vsub.s32 1, %v1479
  %v1481 = vrot.slane %v1454, %v1480
  %v1484 = vmul.f32 %v1471, %v1477
  %v1485 = vmul.f32 %v1472, %v1481
  %v1487 = vlaneseq
  %v1488 = vshrl.u32 %v1487, 7
  %v1489 = vsub.s32 0, %v1488
  %v1490 = vrot.slane %v1455, %v1489
  %v1491 = vlaneseq
  %v1492 = vshrl.u32 %v1491, 7
  %v1493 = vsub.s32 1, %v1492
  %v1494 = vrot.slane %v1455, %v1493
  %v1497 = vadd.f32 %v1484, %v1490
  %v1498 = vadd.f32 %v1485, %v1494
  %v1499 = vmax.f32 %v1497, 0.0
  %v1500 = vmax.f32 %v1498, 0.0
  %v1501 = vpack.c.bf16 %v1499, %v1499
  %v1502 = vpack.c.bf16 %v1500, %v1500
  %v1503 = vld [vmem:[%s9] sm:$0xf]
  %v1504 = vld [vmem:[%s9 + $0x4] sm:$0xf]
  %v1505 = vld [vmem:[%s9 + $0x8] sm:$0xf]
  %v1506 = vld [vmem:[%s9 + $0xc] sm:$0xf]
  %v1507 = vld [vmem:[%s9 + $0x10] sm:$0xf]
  %v1508 = vld [vmem:[%s9 + $0x14] sm:$0xf]
  %v1509 = vld [vmem:[%s9 + $0x18] sm:$0xf]
  %v1510 = vld [vmem:[%s9 + $0x1c] sm:$0xf]
  %v1511 = vld [vmem:[%s9 + $0x20] sm:$0xf]
  %v1512 = vld [vmem:[%s9 + $0x24] sm:$0xf]
  %v1513 = vld [vmem:[%s9 + $0x28] sm:$0xf]
  %v1514 = vld [vmem:[%s9 + $0x2c] sm:$0xf]
  %v1515 = vld [vmem:[%s9 + $0x30] sm:$0xf]
  %v1516 = vld [vmem:[%s9 + $0x34] sm:$0xf]
  %v1517 = vld [vmem:[%s9 + $0x38] sm:$0xf]
  %v1518 = vld [vmem:[%s9 + $0x3c] sm:$0xf]
  %v1519 = vld [vmem:[%s9 + $0x40] sm:$0xf]
  %v1520 = vld [vmem:[%s9 + $0x44] sm:$0xf]
  %v1521 = vld [vmem:[%s9 + $0x48] sm:$0xf]
  %v1522 = vld [vmem:[%s9 + $0x4c] sm:$0xf]
  %v1523 = vld [vmem:[%s9 + $0x50] sm:$0xf]
  %v1524 = vld [vmem:[%s9 + $0x54] sm:$0xf]
  %v1525 = vld [vmem:[%s9 + $0x58] sm:$0xf]
  %v1526 = vld [vmem:[%s9 + $0x5c] sm:$0xf]
  %v1527 = vld [vmem:[%s9 + $0x60] sm:$0xf]
  %v1528 = vld [vmem:[%s9 + $0x64] sm:$0xf]
  %v1529 = vld [vmem:[%s9 + $0x68] sm:$0xf]
  %v1530 = vld [vmem:[%s9 + $0x6c] sm:$0xf]
  %v1531 = vld [vmem:[%s9 + $0x70] sm:$0xf]
  %v1532 = vld [vmem:[%s9 + $0x74] sm:$0xf]
  %v1533 = vld [vmem:[%s9 + $0x78] sm:$0xf]
  %v1534 = vld [vmem:[%s9 + $0x7c] sm:$0xf]
  %v1535 = vld [vmem:[%s10] sm:$0x1]
  %v1537 = vlaneseq
  %v1538 = vshrl.u32 %v1537, 7
  %v1539 = vsub.s32 0, %v1538
  %v1540 = vrot.slane %v1535, %v1539
  %v1574 = vunpack.c.l.b16 %v1503
  %v1575 = vunpack.c.l.b16 %v1504
  %v1576 = vunpack.c.l.b16 %v1505
  %v1577 = vunpack.c.l.b16 %v1506
  %v1578 = vunpack.c.l.b16 %v1507
  %v1579 = vunpack.c.l.b16 %v1508
  %v1580 = vunpack.c.l.b16 %v1509
  %v1581 = vunpack.c.l.b16 %v1510
  %v1582 = vunpack.c.l.b16 %v1511
  %v1583 = vunpack.c.l.b16 %v1512
  %v1584 = vunpack.c.l.b16 %v1513
  %v1585 = vunpack.c.l.b16 %v1514
  %v1586 = vunpack.c.l.b16 %v1515
  %v1587 = vunpack.c.l.b16 %v1516
  %v1588 = vunpack.c.l.b16 %v1517
  %v1589 = vunpack.c.l.b16 %v1518
  %v1590 = vunpack.c.l.b16 %v1519
  %v1591 = vunpack.c.l.b16 %v1520
  %v1592 = vunpack.c.l.b16 %v1521
  %v1593 = vunpack.c.l.b16 %v1522
  %v1594 = vunpack.c.l.b16 %v1523
  %v1595 = vunpack.c.l.b16 %v1524
  %v1596 = vunpack.c.l.b16 %v1525
  %v1597 = vunpack.c.l.b16 %v1526
  %v1598 = vunpack.c.l.b16 %v1527
  %v1599 = vunpack.c.l.b16 %v1528
  %v1600 = vunpack.c.l.b16 %v1529
  %v1601 = vunpack.c.l.b16 %v1530
  %v1602 = vunpack.c.l.b16 %v1531
  %v1603 = vunpack.c.l.b16 %v1532
  %v1604 = vunpack.c.l.b16 %v1533
  %v1605 = vunpack.c.l.b16 %v1534
  %v1606 = vpack.c.b16 %v1575, %v1574
  %v1607 = vpack.c.b16 %v1577, %v1576
  %v1608 = vpack.c.b16 %v1579, %v1578
  %v1609 = vpack.c.b16 %v1581, %v1580
  %v1610 = vpack.c.b16 %v1583, %v1582
  %v1611 = vpack.c.b16 %v1585, %v1584
  %v1612 = vpack.c.b16 %v1587, %v1586
  %v1613 = vpack.c.b16 %v1589, %v1588
  %v1614 = vpack.c.b16 %v1591, %v1590
  %v1615 = vpack.c.b16 %v1593, %v1592
  %v1616 = vpack.c.b16 %v1595, %v1594
  %v1617 = vpack.c.b16 %v1597, %v1596
  %v1618 = vpack.c.b16 %v1599, %v1598
  %v1619 = vpack.c.b16 %v1601, %v1600
  %v1620 = vpack.c.b16 %v1603, %v1602
  %v1621 = vpack.c.b16 %v1605, %v1604
  %1638 = vmatprep.subr.bf16.mxu0 0
  %1639 = vmatpush1.bf16.msra.mxu0 %v1613
  %1640 = vmatprep.subr.bf16.mxu0 0
  %1641 = vmatpush1.bf16.msra.mxu0 %v1612
  %1642 = vmatprep.subr.bf16.mxu0 0
  %1643 = vmatpush1.bf16.msra.mxu0 %v1611
  %1644 = vmatprep.subr.bf16.mxu0 0
  %1645 = vmatpush1.bf16.msra.mxu0 %v1610
  %1646 = vmatprep.subr.bf16.mxu0 0
  %1647 = vmatpush1.bf16.msra.mxu0 %v1609
  %1648 = vmatprep.subr.bf16.mxu0 0
  %1649 = vmatpush1.bf16.msra.mxu0 %v1608
  %1650 = vmatprep.subr.bf16.mxu0 0
  %1651 = vmatpush1.bf16.msra.mxu0 %v1607
  %1652 = vmatprep.subr.bf16.mxu0 0
  %1653 = vmatpush1.bf16.msra.mxu0 %v1606
  %1654 = vmatprep.subr.bf16.mxu0 0
  %1655 = vmatpush2.bf16.msra.mxu0 %v1621
  %1656 = vmatprep.subr.bf16.mxu0 0
  %1657 = vmatpush2.bf16.msra.mxu0 %v1620
  %1658 = vmatprep.subr.bf16.mxu0 0
  %1659 = vmatpush2.bf16.msra.mxu0 %v1619
  %1660 = vmatprep.subr.bf16.mxu0 0
  %1661 = vmatpush2.bf16.msra.mxu0 %v1618
  %1662 = vmatprep.subr.bf16.mxu0 0
  %1663 = vmatpush2.bf16.msra.mxu0 %v1617
  %1664 = vmatprep.subr.bf16.mxu0 0
  %1665 = vmatpush2.bf16.msra.mxu0 %v1616
  %1666 = vmatprep.subr.bf16.mxu0 0
  %1667 = vmatpush2.bf16.msra.mxu0 %v1615
  %1668 = vmatprep.subr.bf16.mxu0 0
  %1669 = vmatpush2.bf16.msra.mxu0 %v1614
  %1670 = vmatprep.mubr.bf16.mxu0 %v1502
  %1671 = vmatmul.mubr.bf16.gmra.mxu0 %v1501
  %v1672 = vpop.f32.mrf.mxu0
  %v1673 = vadd.f32 %v1540, %v1672
  %v1674 = vpop.f32.mrf.mxu0
  %v1675 = vpop.f32.mrf.mxu0
  %v1676 = vpop.f32.mrf.mxu0
  %1677 = vdwg.mxu0
  %1678 = vst [vmem:[%s11] sm:$0xff] %v1673
  // Predicated region
  $region46: #{_encoder_pallas.1} parent=0 // pred_check
    _
  $region47: #{_encoder_pallas.1} parent=0 // pred_check_branch
    %1680 = sbr.rel (0) target = $region49
  $region48: #{_encoder_pallas.1} parent=0 // pred_region
    _
  $region49: #{_encoder_pallas.1} parent=0 // pred_fallthru
    _
  // Predicated region
  $region50: #{_encoder_pallas.1} parent=0 // pred_check
    _
  $region51: #{_encoder_pallas.1} parent=0 // pred_check_branch
    %1682 = sbr.rel (0) target = $region53
  $region52: #{_encoder_pallas.1} parent=0 // pred_region
    _
  $region53: #{_encoder_pallas.1} parent=0 // pred_fallthru
    _

</llo_original>
